<compile_context>
chip_gen: v7x
topology: tpu7x:2x2x1
jax: 0.10.0
libtpu: 0.0.40
codegen_flags: <defaults>
</compile_context>

<pallas_src>
import functools

import jax
import jax.numpy as jnp
from jax.experimental import pallas as pl
from jax.experimental.pallas import tpu as pltpu

IN_DIM = 28 * 28   # 784
H1 = 128
H2 = 64
LATENT = 12


def _cdiv(a, b):
    return -(-a // b)


def _round_up(a, b):
    return _cdiv(a, b) * b


@functools.lru_cache(maxsize=1)
def _hw_info():
    """(num_tensorcores, vmem_ceiling_bytes) — best-effort static hardware query."""
    num_cores = 1
    phys_vmem = 64 * 2 ** 20           # conservative fallback: v7x per-TC VMEM
    try:
        info = pltpu.get_tpu_info()
        for attr in ("num_cores", "tensorcores_per_chip", "num_tensorcores", "core_count"):
            n = getattr(info, attr, None)
            if isinstance(n, int) and n > 0:
                num_cores = n
                break
        cap = getattr(info, "vmem_capacity_bytes", None)
        if isinstance(cap, int) and cap > 0:
            phys_vmem = cap
    except Exception:
        pass
    try:
        n = getattr(jax.devices()[0], "num_cores", None)
        if isinstance(n, int) and n > 0:
            num_cores = max(num_cores, n)
    except Exception:
        pass
    # Leave 25% of physical VMEM for compiler-internal scratch: 96 MiB on 128 MiB chips
    # (v5e/v6e), 48 MiB on v7x's 64 MiB.
    return num_cores, (3 * phys_vmem) // 4


def _row_multiple(in_dtype, out_dtype):
    """Sublane packing granularity for the batch axis (8 @ 32-bit, 16 @ 16-bit, 32 @ 8-bit)."""
    small = min(jnp.dtype(in_dtype).itemsize, jnp.dtype(out_dtype).itemsize)
    return {4: 8, 2: 16, 1: 32}.get(small, 8)


def _choose_tile(batch, tm, mult, num_cores):
    """Batch tile: multiple of `mult`, <= tm. On multi-TensorCore chips (v7x megacore),
    guarantee >=2 grid steps per core when the batch allows it, so each core keeps its
    own prefetch/writeback double-buffering. Single-core chips keep the biggest tile."""
    tm_eff = min(_round_up(tm, mult), _round_up(batch, mult))
    if num_cores >= 2:
        min_steps = 2 * num_cores
        if _cdiv(batch, tm_eff) < min_steps and batch >= mult * min_steps:
            tm_eff = _round_up(_cdiv(batch, min_steps), mult)
    return tm_eff


def _choose_chunks(tm_eff, mult):
    """Split the tile into 2-4 row chunks (each a sublane multiple, >=128 rows) so the
    MXU work of one chunk overlaps the EUP (tanh/sigmoid) work of the previous one."""
    for n in (4, 2):
        chunk = tm_eff // n
        if tm_eff % n == 0 and chunk % mult == 0 and chunk >= 128:
            return n
    return 1


def autoencoder_kernel(x_ref,
                       w1_ref, b1_ref, w2_ref, b2_ref, w3_ref, b3_ref,
                       w4_ref, b4_ref, w5_ref, b5_ref, w6_ref, b6_ref,
                       o_ref, *, n_chunks):
    """All six Linear layers + activations fused; tile processed in `n_chunks` row chunks."""
    tm = x_ref.shape[0]
    chunk = tm // n_chunks

    def linear(h, w_ref, b_ref):
        # bf16 operands on the MXU, f32 accumulation; bias added in f32.
        return jnp.dot(h, w_ref[...], preferred_element_type=jnp.float32) + b_ref[...]

    def sigmoid(v):
        # Exact identity sigmoid(v) = 0.5*tanh(0.5*v) + 0.5: one EUP op per element,
        # scale/shift land in spare VALU slots (v5e's single f32-only EUP is the worry).
        return 0.5 * jnp.tanh(0.5 * v) + 0.5

    for c in range(n_chunks):          # statically unrolled -> MXU/EUP interleave
        lo = c * chunk
        x = x_ref[lo:lo + chunk, :].astype(jnp.bfloat16)     # no-op when x is bf16
        # Encoder
        h = jnp.tanh(linear(x, w1_ref, b1_ref)).astype(jnp.bfloat16)   # (chunk, 128)
        h = jnp.tanh(linear(h, w2_ref, b2_ref)).astype(jnp.bfloat16)   # (chunk, 64)
        z = jnp.tanh(linear(h, w3_ref, b3_ref)).astype(jnp.bfloat16)   # (chunk, 12)
        # Decoder
        h = jnp.tanh(linear(z, w4_ref, b4_ref)).astype(jnp.bfloat16)   # (chunk, 64)
        h = jnp.tanh(linear(h, w5_ref, b5_ref)).astype(jnp.bfloat16)   # (chunk, 128)
        logits = linear(h, w6_ref, b6_ref)                             # (chunk, 784) f32
        o_ref[lo:lo + chunk, :] = sigmoid(logits).astype(o_ref.dtype)


def make_params(key):
    """Deterministic params matching torch.nn.Linear's default init
    (uniform(-1/sqrt(fan_in), 1/sqrt(fan_in))). Stored as (in, out); bias (1, out)."""
    dims = [(IN_DIM, H1), (H1, H2), (H2, LATENT),
            (LATENT, H2), (H2, H1), (H1, IN_DIM)]
    params = []
    keys = jax.random.split(key, 2 * len(dims))
    for i, (fan_in, fan_out) in enumerate(dims):
        bound = 1.0 / jnp.sqrt(jnp.float32(fan_in))
        w = jax.random.uniform(keys[2 * i], (fan_in, fan_out), jnp.float32,
                               minval=-bound, maxval=bound)
        b = jax.random.uniform(keys[2 * i + 1], (1, fan_out), jnp.float32,
                               minval=-bound, maxval=bound)
        params.append((w, b))
    return params


def prepare_params(params):
    """One-time host-side cast: weights -> bf16 (MXU operands), biases -> f32.
    Do this outside the jitted wrapper so the cast isn't re-run (and re-read from HBM)
    on every forward call."""
    return [(w.astype(jnp.bfloat16), b.astype(jnp.float32)) for w, b in params]


@functools.partial(jax.jit, static_argnames=("tm", "out_dtype"))
def autoencoder_forward(x, params, *, tm=1024, out_dtype=jnp.bfloat16):
    """x: (B, 784), float (bf16 preferred; f32 also accepted). Returns (B, 784) in
    out_dtype (default bfloat16 — note: bf16 I/O deviates from a pure-f32 torch forward
    at the ~1e-3 level; pass out_dtype=jnp.float32 and f32 x for the f32 I/O path)."""
    # TODO(synk): callers with raw uint8 MNIST should pre-scale to [0,1] floats; the
    # kernel itself only handles float inputs (casting + /255 is not fused here).
    B, D = x.shape
    assert D == IN_DIM

    num_cores, vmem_ceiling = _hw_info()
    mult = _row_multiple(x.dtype, out_dtype)
    tm_eff = _choose_tile(B, tm, mult, num_cores)
    n_chunks = _choose_chunks(tm_eff, mult)

    Bp = _round_up(B, tm_eff)
    xp = x if Bp == B else jnp.pad(x, ((0, Bp - B), (0, 0)))
    grid = (Bp // tm_eff,)

    # Weights as bf16 MXU operands, biases f32 (cast is a no-op for prepare_params output).
    flat_params = []
    param_specs = []
    p_bytes = 0
    for w, b in params:
        wb = w if w.dtype == jnp.bfloat16 else w.astype(jnp.bfloat16)
        bf = b if b.dtype == jnp.float32 else b.astype(jnp.float32)
        flat_params += [wb, bf]
        param_specs += [pl.BlockSpec(wb.shape, lambda i: (0, 0)),
                        pl.BlockSpec(bf.shape, lambda i: (0, 0))]
        p_bytes += 2 * (wb.size * 2 + bf.size * 4)          # double-buffered params

    # VMEM budget: double-buffered I/O tiles + params + kernel-internal temporaries
    # (bf16 x copy, f32 logits, intermediate h tiles; Python-unrolled chunks don't bound
    # live ranges, so budget the full tile). Generation-specific ceiling, no 32 MiB clamp.
    in_item = jnp.dtype(x.dtype).itemsize
    out_item = jnp.dtype(out_dtype).itemsize
    io_bytes = 2 * tm_eff * IN_DIM * (in_item + out_item)
    tmp_bytes = tm_eff * (IN_DIM * (2 + 4) + (H1 + H2 + LATENT) * 8)
    need = io_bytes + tmp_bytes + p_bytes
    vmem_limit = int(min(vmem_ceiling, max(32 * 2 ** 20, (5 * need) // 4)))

    out = pl.pallas_call(
        functools.partial(autoencoder_kernel, n_chunks=n_chunks),
        out_shape=jax.ShapeDtypeStruct((Bp, IN_DIM), out_dtype),
        grid_spec=pltpu.PrefetchScalarGridSpec(
            num_scalar_prefetch=0,
            grid=grid,
            in_specs=[pl.BlockSpec((tm_eff, IN_DIM), lambda i: (i, 0))] + param_specs,
            out_specs=pl.BlockSpec((tm_eff, IN_DIM), lambda i: (i, 0)),
        ),
        compiler_params=pltpu.CompilerParams(
            dimension_semantics=("parallel",),
            vmem_limit_bytes=vmem_limit),
    )(xp, *flat_params)

    return out if Bp == B else out[:B]


def reference_forward(x, params, mxu_dtype=jnp.float32):
    acts = [jnp.tanh] * 5 + [jax.nn.sigmoid]
    h = x.astype(jnp.float32)
    for (w, b), act in zip(params, acts):
        y = jnp.dot(h.astype(mxu_dtype), w.astype(mxu_dtype),
                    preferred_element_type=jnp.float32) + b.astype(jnp.float32)
        h = act(y)
    return h


if __name__ == "__main__":
    key = jax.random.PRNGKey(0)
    k_x, k_p = jax.random.split(key)

    # Small, deliberately non-multiple-of-8 batch: exercises batch padding, the
    # TensorCore-count-aware tile choice, and the single-chunk kernel path.
    B = 29
    x_f32 = jax.random.uniform(k_x, (B, IN_DIM), jnp.float32)   # MNIST-like pixels in [0,1)
    params = make_params(k_p)
    params_bf16 = prepare_params(params)     # one-time bf16 weight cast, outside jit

    # Recommended path: bf16 I/O end to end.
    x_bf16 = x_f32.astype(jnp.bfloat16)
    out = autoencoder_forward(x_bf16, params_bf16)
    out = jax.block_until_ready(out)
    assert out.shape == (B, IN_DIM) and out.dtype == jnp.bfloat16

    out_f = out.astype(jnp.float32)
    # Matched-precision reference (same bf16 MXU operands, f32 accumulation).
    ref_matched = reference_forward(x_bf16, params, mxu_dtype=jnp.bfloat16)
    assert jnp.allclose(out_f, ref_matched, atol=2e-2, rtol=2e-2), "mismatch vs bf16 reference"
    # Pure f32 reference with tolerance loosened for bf16 operands + bf16 output rounding.
    ref_f32 = reference_forward(x_f32, params, mxu_dtype=jnp.float32)
    assert jnp.allclose(out_f, ref_f32, atol=5e-2, rtol=5e-2), "mismatch vs f32 reference"

    # f32 I/O path (different tile granularity / output dtype) still works.
    out32 = autoencoder_forward(x_f32, params_bf16, out_dtype=jnp.float32)
    out32 = jax.block_until_ready(out32)
    assert out32.shape == (B, IN_DIM) and out32.dtype == jnp.float32
    assert jnp.allclose(out32, ref_f32, atol=5e-2, rtol=5e-2), "mismatch (f32 I/O) vs f32 reference"

    print("KERNEL_OK")
</pallas_src>

<mosaic_0001>
module attributes {stable_mosaic.version = 11 : i64} {
  func.func @autoencoder_kernel(%arg0: i32, %arg1: memref<32x784xbf16, #tpu.memory_space<vmem>>, %arg2: memref<784x128xbf16, #tpu.memory_space<vmem>>, %arg3: memref<1x128xf32, #tpu.memory_space<vmem>>, %arg4: memref<128x64xbf16, #tpu.memory_space<vmem>>, %arg5: memref<1x64xf32, #tpu.memory_space<vmem>>, %arg6: memref<64x12xbf16, #tpu.memory_space<vmem>>, %arg7: memref<1x12xf32, #tpu.memory_space<vmem>>, %arg8: memref<12x64xbf16, #tpu.memory_space<vmem>>, %arg9: memref<1x64xf32, #tpu.memory_space<vmem>>, %arg10: memref<64x128xbf16, #tpu.memory_space<vmem>>, %arg11: memref<1x128xf32, #tpu.memory_space<vmem>>, %arg12: memref<128x784xbf16, #tpu.memory_space<vmem>>, %arg13: memref<1x784xf32, #tpu.memory_space<vmem>>, %arg14: memref<32x784xbf16, #tpu.memory_space<vmem>>) attributes {dimension_semantics = [#tpu.dimension_semantics<parallel>], iteration_bounds = array<i64: 1>, scalar_prefetch = 0 : i64, scratch_operands = 0 : i64, tpu.core_type = #tpu.core_type<tc>, window_params = [{transform_indices = @transform_0, window_bounds = array<i64: 32, 784>}, {pipeline_mode = #tpu.pipeline_mode<synchronous>, transform_indices = @transform_1, window_bounds = array<i64: 784, 128>}, {pipeline_mode = #tpu.pipeline_mode<synchronous>, transform_indices = @transform_2, window_bounds = array<i64: 1, 128>}, {pipeline_mode = #tpu.pipeline_mode<synchronous>, transform_indices = @transform_3, window_bounds = array<i64: 128, 64>}, {pipeline_mode = #tpu.pipeline_mode<synchronous>, transform_indices = @transform_4, window_bounds = array<i64: 1, 64>}, {pipeline_mode = #tpu.pipeline_mode<synchronous>, transform_indices = @transform_5, window_bounds = array<i64: 64, 12>}, {pipeline_mode = #tpu.pipeline_mode<synchronous>, transform_indices = @transform_6, window_bounds = array<i64: 1, 12>}, {pipeline_mode = #tpu.pipeline_mode<synchronous>, transform_indices = @transform_7, window_bounds = array<i64: 12, 64>}, {pipeline_mode = #tpu.pipeline_mode<synchronous>, transform_indices = @transform_8, window_bounds = array<i64: 1, 64>}, {pipeline_mode = #tpu.pipeline_mode<synchronous>, transform_indices = @transform_9, window_bounds = array<i64: 64, 128>}, {pipeline_mode = #tpu.pipeline_mode<synchronous>, transform_indices = @transform_10, window_bounds = array<i64: 1, 128>}, {pipeline_mode = #tpu.pipeline_mode<synchronous>, transform_indices = @transform_11, window_bounds = array<i64: 128, 784>}, {pipeline_mode = #tpu.pipeline_mode<synchronous>, transform_indices = @transform_12, window_bounds = array<i64: 1, 784>}, {transform_indices = @transform_13, window_bounds = array<i64: 32, 784>}]} {
    %c0 = arith.constant 0 : index
    %c0_0 = arith.constant 0 : index
    %0 = vector.load %arg1[%c0, %c0_0] : memref<32x784xbf16, #tpu.memory_space<vmem>>, vector<32x784xbf16>
    %c0_1 = arith.constant 0 : index
    %c0_2 = arith.constant 0 : index
    %1 = vector.load %arg2[%c0_1, %c0_2] : memref<784x128xbf16, #tpu.memory_space<vmem>>, vector<784x128xbf16>
    %cst = arith.constant dense<0.000000e+00> : vector<32x128xf32>
    %2 = tpu.matmul %0, %1, %cst {dimension_numbers = #tpu.dot_dimension_numbers<[1], [0], [0], [1], [0, 0, 1, 1], [], []>} : vector<32x784xbf16>, vector<784x128xbf16>, vector<32x128xf32> -> vector<32x128xf32>
    %c0_3 = arith.constant 0 : index
    %c0_4 = arith.constant 0 : index
    %3 = vector.load %arg3[%c0_3, %c0_4] : memref<1x128xf32, #tpu.memory_space<vmem>>, vector<1x128xf32>
    %4 = vector.broadcast %3 : vector<1x128xf32> to vector<32x128xf32>
    %5 = arith.addf %2, %4 : vector<32x128xf32>
    %6 = math.tanh %5 : vector<32x128xf32>
    %7 = arith.truncf %6 : vector<32x128xf32> to vector<32x128xbf16>
    %c0_5 = arith.constant 0 : index
    %c0_6 = arith.constant 0 : index
    %8 = vector.load %arg4[%c0_5, %c0_6] : memref<128x64xbf16, #tpu.memory_space<vmem>>, vector<128x64xbf16>
    %cst_7 = arith.constant dense<0.000000e+00> : vector<32x64xf32>
    %9 = tpu.matmul %7, %8, %cst_7 {dimension_numbers = #tpu.dot_dimension_numbers<[1], [0], [0], [1], [0, 0, 1, 1], [], []>} : vector<32x128xbf16>, vector<128x64xbf16>, vector<32x64xf32> -> vector<32x64xf32>
    %c0_8 = arith.constant 0 : index
    %c0_9 = arith.constant 0 : index
    %10 = vector.load %arg5[%c0_8, %c0_9] : memref<1x64xf32, #tpu.memory_space<vmem>>, vector<1x64xf32>
    %11 = vector.broadcast %10 : vector<1x64xf32> to vector<32x64xf32>
    %12 = arith.addf %9, %11 : vector<32x64xf32>
    %13 = math.tanh %12 : vector<32x64xf32>
    %14 = arith.truncf %13 : vector<32x64xf32> to vector<32x64xbf16>
    %c0_10 = arith.constant 0 : index
    %c0_11 = arith.constant 0 : index
    %15 = vector.load %arg6[%c0_10, %c0_11] : memref<64x12xbf16, #tpu.memory_space<vmem>>, vector<64x12xbf16>
    %cst_12 = arith.constant dense<0.000000e+00> : vector<32x12xf32>
    %16 = tpu.matmul %14, %15, %cst_12 {dimension_numbers = #tpu.dot_dimension_numbers<[1], [0], [0], [1], [0, 0, 1, 1], [], []>} : vector<32x64xbf16>, vector<64x12xbf16>, vector<32x12xf32> -> vector<32x12xf32>
    %c0_13 = arith.constant 0 : index
    %c0_14 = arith.constant 0 : index
    %17 = vector.load %arg7[%c0_13, %c0_14] : memref<1x12xf32, #tpu.memory_space<vmem>>, vector<1x12xf32>
    %18 = vector.broadcast %17 : vector<1x12xf32> to vector<32x12xf32>
    %19 = arith.addf %16, %18 : vector<32x12xf32>
    %20 = math.tanh %19 : vector<32x12xf32>
    %21 = arith.truncf %20 : vector<32x12xf32> to vector<32x12xbf16>
    %c0_15 = arith.constant 0 : index
    %c0_16 = arith.constant 0 : index
    %22 = vector.load %arg8[%c0_15, %c0_16] : memref<12x64xbf16, #tpu.memory_space<vmem>>, vector<12x64xbf16>
    %cst_17 = arith.constant dense<0.000000e+00> : vector<32x64xf32>
    %23 = tpu.matmul %21, %22, %cst_17 {dimension_numbers = #tpu.dot_dimension_numbers<[1], [0], [0], [1], [0, 0, 1, 1], [], []>} : vector<32x12xbf16>, vector<12x64xbf16>, vector<32x64xf32> -> vector<32x64xf32>
    %c0_18 = arith.constant 0 : index
    %c0_19 = arith.constant 0 : index
    %24 = vector.load %arg9[%c0_18, %c0_19] : memref<1x64xf32, #tpu.memory_space<vmem>>, vector<1x64xf32>
    %25 = vector.broadcast %24 : vector<1x64xf32> to vector<32x64xf32>
    %26 = arith.addf %23, %25 : vector<32x64xf32>
    %27 = math.tanh %26 : vector<32x64xf32>
    %28 = arith.truncf %27 : vector<32x64xf32> to vector<32x64xbf16>
    %c0_20 = arith.constant 0 : index
    %c0_21 = arith.constant 0 : index
    %29 = vector.load %arg10[%c0_20, %c0_21] : memref<64x128xbf16, #tpu.memory_space<vmem>>, vector<64x128xbf16>
    %cst_22 = arith.constant dense<0.000000e+00> : vector<32x128xf32>
    %30 = tpu.matmul %28, %29, %cst_22 {dimension_numbers = #tpu.dot_dimension_numbers<[1], [0], [0], [1], [0, 0, 1, 1], [], []>} : vector<32x64xbf16>, vector<64x128xbf16>, vector<32x128xf32> -> vector<32x128xf32>
    %c0_23 = arith.constant 0 : index
    %c0_24 = arith.constant 0 : index
    %31 = vector.load %arg11[%c0_23, %c0_24] : memref<1x128xf32, #tpu.memory_space<vmem>>, vector<1x128xf32>
    %32 = vector.broadcast %31 : vector<1x128xf32> to vector<32x128xf32>
    %33 = arith.addf %30, %32 : vector<32x128xf32>
    %34 = math.tanh %33 : vector<32x128xf32>
    %35 = arith.truncf %34 : vector<32x128xf32> to vector<32x128xbf16>
    %c0_25 = arith.constant 0 : index
    %c0_26 = arith.constant 0 : index
    %36 = vector.load %arg12[%c0_25, %c0_26] : memref<128x784xbf16, #tpu.memory_space<vmem>>, vector<128x784xbf16>
    %cst_27 = arith.constant dense<0.000000e+00> : vector<32x784xf32>
    %37 = tpu.matmul %35, %36, %cst_27 {dimension_numbers = #tpu.dot_dimension_numbers<[1], [0], [0], [1], [0, 0, 1, 1], [], []>} : vector<32x128xbf16>, vector<128x784xbf16>, vector<32x784xf32> -> vector<32x784xf32>
    %c0_28 = arith.constant 0 : index
    %c0_29 = arith.constant 0 : index
    %38 = vector.load %arg13[%c0_28, %c0_29] : memref<1x784xf32, #tpu.memory_space<vmem>>, vector<1x784xf32>
    %39 = vector.broadcast %38 : vector<1x784xf32> to vector<32x784xf32>
    %40 = arith.addf %37, %39 : vector<32x784xf32>
    %cst_30 = arith.constant 5.000000e-01 : f32
    %41 = vector.broadcast %cst_30 : f32 to vector<32x784xf32>
    %42 = arith.mulf %41, %40 : vector<32x784xf32>
    %43 = math.tanh %42 : vector<32x784xf32>
    %cst_31 = arith.constant 5.000000e-01 : f32
    %44 = vector.broadcast %cst_31 : f32 to vector<32x784xf32>
    %45 = arith.mulf %44, %43 : vector<32x784xf32>
    %cst_32 = arith.constant 5.000000e-01 : f32
    %46 = vector.broadcast %cst_32 : f32 to vector<32x784xf32>
    %47 = arith.addf %45, %46 : vector<32x784xf32>
    %48 = arith.truncf %47 : vector<32x784xf32> to vector<32x784xbf16>
    %c0_33 = arith.constant 0 : index
    %c0_34 = arith.constant 0 : index
    %49 = vector.load %arg14[%c0_33, %c0_34] : memref<32x784xbf16, #tpu.memory_space<vmem>>, vector<32x784xbf16>
    tpu.vector_store %arg14[%c0_33, %c0_34], %48 {strides = array<i32>} : memref<32x784xbf16, #tpu.memory_space<vmem>>, vector<32x784xbf16>,
    return
  }
  func.func @transform_0(%arg0: i32) -> (i32, i32) {
    %c0_i32 = arith.constant 0 : i32
    %c0_i32_0 = arith.constant 0 : i32
    return %arg0, %c0_i32 : i32, i32
  }
  func.func @transform_1(%arg0: i32) -> (i32, i32) {
    %c0_i32 = arith.constant 0 : i32
    %c0_i32_0 = arith.constant 0 : i32
    %c0_i32_1 = arith.constant 0 : i32
    return %c0_i32, %c0_i32_0 : i32, i32
  }
  func.func @transform_2(%arg0: i32) -> (i32, i32) {
    %c0_i32 = arith.constant 0 : i32
    %c0_i32_0 = arith.constant 0 : i32
    %c0_i32_1 = arith.constant 0 : i32
    return %c0_i32, %c0_i32_0 : i32, i32
  }
  func.func @transform_3(%arg0: i32) -> (i32, i32) {
    %c0_i32 = arith.constant 0 : i32
    %c0_i32_0 = arith.constant 0 : i32
    %c0_i32_1 = arith.constant 0 : i32
    return %c0_i32, %c0_i32_0 : i32, i32
  }
  func.func @transform_4(%arg0: i32) -> (i32, i32) {
    %c0_i32 = arith.constant 0 : i32
    %c0_i32_0 = arith.constant 0 : i32
    %c0_i32_1 = arith.constant 0 : i32
    return %c0_i32, %c0_i32_0 : i32, i32
  }
  func.func @transform_5(%arg0: i32) -> (i32, i32) {
    %c0_i32 = arith.constant 0 : i32
    %c0_i32_0 = arith.constant 0 : i32
    %c0_i32_1 = arith.constant 0 : i32
    return %c0_i32, %c0_i32_0 : i32, i32
  }
  func.func @transform_6(%arg0: i32) -> (i32, i32) {
    %c0_i32 = arith.constant 0 : i32
    %c0_i32_0 = arith.constant 0 : i32
    %c0_i32_1 = arith.constant 0 : i32
    return %c0_i32, %c0_i32_0 : i32, i32
  }
  func.func @transform_7(%arg0: i32) -> (i32, i32) {
    %c0_i32 = arith.constant 0 : i32
    %c0_i32_0 = arith.constant 0 : i32
    %c0_i32_1 = arith.constant 0 : i32
    return %c0_i32, %c0_i32_0 : i32, i32
  }
  func.func @transform_8(%arg0: i32) -> (i32, i32) {
    %c0_i32 = arith.constant 0 : i32
    %c0_i32_0 = arith.constant 0 : i32
    %c0_i32_1 = arith.constant 0 : i32
    return %c0_i32, %c0_i32_0 : i32, i32
  }
  func.func @transform_9(%arg0: i32) -> (i32, i32) {
    %c0_i32 = arith.constant 0 : i32
    %c0_i32_0 = arith.constant 0 : i32
    %c0_i32_1 = arith.constant 0 : i32
    return %c0_i32, %c0_i32_0 : i32, i32
  }
  func.func @transform_10(%arg0: i32) -> (i32, i32) {
    %c0_i32 = arith.constant 0 : i32
    %c0_i32_0 = arith.constant 0 : i32
    %c0_i32_1 = arith.constant 0 : i32
    return %c0_i32, %c0_i32_0 : i32, i32
  }
  func.func @transform_11(%arg0: i32) -> (i32, i32) {
    %c0_i32 = arith.constant 0 : i32
    %c0_i32_0 = arith.constant 0 : i32
    %c0_i32_1 = arith.constant 0 : i32
    return %c0_i32, %c0_i32_0 : i32, i32
  }
  func.func @transform_12(%arg0: i32) -> (i32, i32) {
    %c0_i32 = arith.constant 0 : i32
    %c0_i32_0 = arith.constant 0 : i32
    %c0_i32_1 = arith.constant 0 : i32
    return %c0_i32, %c0_i32_0 : i32, i32
  }
  func.func @transform_13(%arg0: i32) -> (i32, i32) {
    %c0_i32 = arith.constant 0 : i32
    %c0_i32_0 = arith.constant 0 : i32
    return %arg0, %c0_i32 : i32, i32
  }
}

</mosaic_0001>

<llo_original>
// kernel: autoencoder_forward.1
$region0: #{autoencoder_forward.1}
  #allocation0 [shape = 'u32[]', space=smem, size = 0x4, offset = 0x4, fixed_abs, tag = 'smem constant byte address 0x4 - core index']
  #allocation1 [shape = 'u32[144,128]{1,0:T(1,128)}', space=vmem, size = 0x12000, scoped, tag = 'internal scratch']
  %s0 = inlined_call_operand.vmem [shape: bf16[32,784], index: 0, kind: input, shape index: {}]
  %s1 = inlined_call_operand.vmem [shape: bf16[784,128], index: 1, kind: input, shape index: {}]
  %s2 = inlined_call_operand.vmem [shape: f32[1,128], index: 2, kind: input, shape index: {}]
  %s3 = inlined_call_operand.vmem [shape: bf16[128,64], index: 3, kind: input, shape index: {}]
  %s4 = inlined_call_operand.vmem [shape: f32[1,64], index: 4, kind: input, shape index: {}]
  %s5 = inlined_call_operand.vmem [shape: bf16[64,12], index: 5, kind: input, shape index: {}]
  %s6 = inlined_call_operand.vmem [shape: f32[1,12], index: 6, kind: input, shape index: {}]
  %s7 = inlined_call_operand.vmem [shape: bf16[12,64], index: 7, kind: input, shape index: {}]
  %s8 = inlined_call_operand.vmem [shape: f32[1,64], index: 8, kind: input, shape index: {}]
  %s9 = inlined_call_operand.vmem [shape: bf16[64,128], index: 9, kind: input, shape index: {}]
  %s10 = inlined_call_operand.vmem [shape: f32[1,128], index: 10, kind: input, shape index: {}]
  %s11 = inlined_call_operand.vmem [shape: bf16[128,784], index: 11, kind: input, shape index: {}]
  %s12 = inlined_call_operand.vmem [shape: f32[1,784], index: 12, kind: input, shape index: {}]
  %s13 = inlined_call_operand.hbm [shape: bf16[32,784], index: 13, kind: output, shape index: {}]
  %s14 = sld [smem:[#allocation0]]
  $region62: #{autoencoder_forward.1} parent=0
    _
  %s16 = ssub.s32 1, %s14
  %s17 = scalar_select 0, %s16, %s14
  $region1: #{autoencoder_forward.1} parent=0
    #allocation2 [shape = 'u8[57344]{0}', space=vmem, size = 0xe000, scoped, tag = 'output window, operand 0, single buffered']
    #allocation3 [shape = 's32[1]{0}', space=sflag, size = 0x4, scoped, tag = 'scoped memory for autoencoder_forward.1']
    %18 = vsyncpa [#allocation3], 0
    // Predicated region
    $region2: #{autoencoder_forward.1} parent=1 // pred_check
      _
    $region3: #{autoencoder_forward.1} parent=1 // pred_check_branch
      %20 = sbr.rel (0) target = $region5
    $region4: #{autoencoder_forward.1} parent=1 // pred_region
      _
    $region5: #{autoencoder_forward.1} parent=1 // pred_fallthru
      _
    // Predicated region
    $region6: #{autoencoder_forward.1} parent=1 // pred_check
      _
    $region7: #{autoencoder_forward.1} parent=1 // pred_check_branch
      %22 = sbr.rel (0) target = $region9
    $region8: #{autoencoder_forward.1} parent=1 // pred_region
      _
    $region9: #{autoencoder_forward.1} parent=1 // pred_fallthru
      _
    // Predicated region
    $region10: #{autoencoder_forward.1} parent=1 // pred_check
      _
    $region11: #{autoencoder_forward.1} parent=1 // pred_check_branch
      %24 = sbr.rel (0) target = $region13
    $region12: #{autoencoder_forward.1} parent=1 // pred_region
      _
    $region13: #{autoencoder_forward.1} parent=1 // pred_fallthru
      _
    // Predicated region
    $region14: #{autoencoder_forward.1} parent=1 // pred_check
      _
    $region15: #{autoencoder_forward.1} parent=1 // pred_check_branch
      %26 = sbr.rel (0) target = $region17
    $region16: #{autoencoder_forward.1} parent=1 // pred_region
      _
    $region17: #{autoencoder_forward.1} parent=1 // pred_fallthru
      _
    // Predicated region
    $region18: #{autoencoder_forward.1} parent=1 // pred_check
      _
    $region19: #{autoencoder_forward.1} parent=1 // pred_check_branch
      %28 = sbr.rel (0) target = $region21
    $region20: #{autoencoder_forward.1} parent=1 // pred_region
      _
    $region21: #{autoencoder_forward.1} parent=1 // pred_fallthru
      _
    // Predicated region
    $region22: #{autoencoder_forward.1} parent=1 // pred_check
      _
    $region23: #{autoencoder_forward.1} parent=1 // pred_check_branch
      %30 = sbr.rel (0) target = $region25
    $region24: #{autoencoder_forward.1} parent=1 // pred_region
      _
    $region25: #{autoencoder_forward.1} parent=1 // pred_fallthru
      _
    // Predicated region
    $region26: #{autoencoder_forward.1} parent=1 // pred_check
      _
    $region27: #{autoencoder_forward.1} parent=1 // pred_check_branch
      %32 = sbr.rel (0) target = $region29
    $region28: #{autoencoder_forward.1} parent=1 // pred_region
      _
    $region29: #{autoencoder_forward.1} parent=1 // pred_fallthru
      _
    // Predicated region
    $region30: #{autoencoder_forward.1} parent=1 // pred_check
      _
    $region31: #{autoencoder_forward.1} parent=1 // pred_check_branch
      %34 = sbr.rel (0) target = $region33
    $region32: #{autoencoder_forward.1} parent=1 // pred_region
      _
    $region33: #{autoencoder_forward.1} parent=1 // pred_fallthru
      _
    // Predicated region
    $region34: #{autoencoder_forward.1} parent=1 // pred_check
      _
    $region35: #{autoencoder_forward.1} parent=1 // pred_check_branch
      %36 = sbr.rel (0) target = $region37
    $region36: #{autoencoder_forward.1} parent=1 // pred_region
      _
    $region37: #{autoencoder_forward.1} parent=1 // pred_fallthru
      _
    // Predicated region
    $region38: #{autoencoder_forward.1} parent=1 // pred_check
      _
    $region39: #{autoencoder_forward.1} parent=1 // pred_check_branch
      %38 = sbr.rel (0) target = $region41
    $region40: #{autoencoder_forward.1} parent=1 // pred_region
      _
    $region41: #{autoencoder_forward.1} parent=1 // pred_fallthru
      _
    // Predicated region
    $region42: #{autoencoder_forward.1} parent=1 // pred_check
      _
    $region43: #{autoencoder_forward.1} parent=1 // pred_check_branch
      %40 = sbr.rel (0) target = $region45
    $region44: #{autoencoder_forward.1} parent=1 // pred_region
      _
    $region45: #{autoencoder_forward.1} parent=1 // pred_fallthru
      _
    // Predicated region
    $region46: #{autoencoder_forward.1} parent=1 // pred_check
      _
    $region47: #{autoencoder_forward.1} parent=1 // pred_check_branch
      %42 = sbr.rel (0) target = $region49
    $region48: #{autoencoder_forward.1} parent=1 // pred_region
      _
    $region49: #{autoencoder_forward.1} parent=1 // pred_fallthru
      _
    // Predicated region
    $region50: #{autoencoder_forward.1} parent=1 // pred_check
      _
    $region51: #{autoencoder_forward.1} parent=1 // pred_check_branch
      %44 = sbr.rel (0) target = $region53
    $region52: #{autoencoder_forward.1} parent=1 // pred_region
      _
    $region53: #{autoencoder_forward.1} parent=1 // pred_fallthru
      _
    %v46 = vld [vmem:[%s0] sm:$0xff]
    %v47 = vld [vmem:[%s0 + $0x8] sm:$0xff]
    %v48 = vld [vmem:[%s0 + $0x10] sm:$0xff]
    %v49 = vld [vmem:[%s0 + $0x18] sm:$0xf]
    %v50 = vld [vmem:[%s0 + $0x1c] sm:$0xff]
    %v51 = vld [vmem:[%s0 + $0x24] sm:$0xff]
    %v52 = vld [vmem:[%s0 + $0x2c] sm:$0xff]
    %v53 = vld [vmem:[%s0 + $0x34] sm:$0xf]
    %v54 = vld [vmem:[%s0 + $0x38] sm:$0xff]
    %v55 = vld [vmem:[%s0 + $0x40] sm:$0xff]
    %v56 = vld [vmem:[%s0 + $0x48] sm:$0xff]
    %v57 = vld [vmem:[%s0 + $0x50] sm:$0xf]
    %v58 = vld [vmem:[%s0 + $0x54] sm:$0xff]
    %v59 = vld [vmem:[%s0 + $0x5c] sm:$0xff]
    %v60 = vld [vmem:[%s0 + $0x64] sm:$0xff]
    %v61 = vld [vmem:[%s0 + $0x6c] sm:$0xf]
    %v62 = vld [vmem:[%s1] sm:$0xf]
    %v63 = vld [vmem:[%s1 + $0x4] sm:$0xf]
    %v64 = vld [vmem:[%s1 + $0x8] sm:$0xf]
    %v65 = vld [vmem:[%s1 + $0xc] sm:$0xf]
    %v66 = vld [vmem:[%s1 + $0x10] sm:$0xf]
    %v67 = vld [vmem:[%s1 + $0x14] sm:$0xf]
    %v68 = vld [vmem:[%s1 + $0x18] sm:$0xf]
    %v69 = vld [vmem:[%s1 + $0x1c] sm:$0xf]
    %v70 = vld [vmem:[%s1 + $0x20] sm:$0xf]
    %v71 = vld [vmem:[%s1 + $0x24] sm:$0xf]
    %v72 = vld [vmem:[%s1 + $0x28] sm:$0xf]
    %v73 = vld [vmem:[%s1 + $0x2c] sm:$0xf]
    %v74 = vld [vmem:[%s1 + $0x30] sm:$0xf]
    %v75 = vld [vmem:[%s1 + $0x34] sm:$0xf]
    %v76 = vld [vmem:[%s1 + $0x38] sm:$0xf]
    %v77 = vld [vmem:[%s1 + $0x3c] sm:$0xf]
    %v78 = vld [vmem:[%s1 + $0x40] sm:$0xf]
    %v79 = vld [vmem:[%s1 + $0x44] sm:$0xf]
    %v80 = vld [vmem:[%s1 + $0x48] sm:$0xf]
    %v81 = vld [vmem:[%s1 + $0x4c] sm:$0xf]
    %v82 = vld [vmem:[%s1 + $0x50] sm:$0xf]
    %v83 = vld [vmem:[%s1 + $0x54] sm:$0xf]
    %v84 = vld [vmem:[%s1 + $0x58] sm:$0xf]
    %v85 = vld [vmem:[%s1 + $0x5c] sm:$0xf]
    %v86 = vld [vmem:[%s1 + $0x60] sm:$0xf]
    %v87 = vld [vmem:[%s1 + $0x64] sm:$0xf]
    %v88 = vld [vmem:[%s1 + $0x68] sm:$0xf]
    %v89 = vld [vmem:[%s1 + $0x6c] sm:$0xf]
    %v90 = vld [vmem:[%s1 + $0x70] sm:$0xf]
    %v91 = vld [vmem:[%s1 + $0x74] sm:$0xf]
    %v92 = vld [vmem:[%s1 + $0x78] sm:$0xf]
    %v93 = vld [vmem:[%s1 + $0x7c] sm:$0xf]
    %v94 = vld [vmem:[%s1 + $0x80] sm:$0xf]
    %v95 = vld [vmem:[%s1 + $0x84] sm:$0xf]
    %v96 = vld [vmem:[%s1 + $0x88] sm:$0xf]
    %v97 = vld [vmem:[%s1 + $0x8c] sm:$0xf]
    %v98 = vld [vmem:[%s1 + $0x90] sm:$0xf]
    %v99 = vld [vmem:[%s1 + $0x94] sm:$0xf]
    %v100 = vld [vmem:[%s1 + $0x98] sm:$0xf]
    %v101 = vld [vmem:[%s1 + $0x9c] sm:$0xf]
    %v102 = vld [vmem:[%s1 + $0xa0] sm:$0xf]
    %v103 = vld [vmem:[%s1 + $0xa4] sm:$0xf]
    %v104 = vld [vmem:[%s1 + $0xa8] sm:$0xf]
    %v105 = vld [vmem:[%s1 + $0xac] sm:$0xf]
    %v106 = vld [vmem:[%s1 + $0xb0] sm:$0xf]
    %v107 = vld [vmem:[%s1 + $0xb4] sm:$0xf]
    %v108 = vld [vmem:[%s1 + $0xb8] sm:$0xf]
    %v109 = vld [vmem:[%s1 + $0xbc] sm:$0xf]
    %v110 = vld [vmem:[%s1 + $0xc0] sm:$0xf]
    %v111 = vld [vmem:[%s1 + $0xc4] sm:$0xf]
    %v112 = vld [vmem:[%s1 + $0xc8] sm:$0xf]
    %v113 = vld [vmem:[%s1 + $0xcc] sm:$0xf]
    %v114 = vld [vmem:[%s1 + $0xd0] sm:$0xf]
    %v115 = vld [vmem:[%s1 + $0xd4] sm:$0xf]
    %v116 = vld [vmem:[%s1 + $0xd8] sm:$0xf]
    %v117 = vld [vmem:[%s1 + $0xdc] sm:$0xf]
    %v118 = vld [vmem:[%s1 + $0xe0] sm:$0xf]
    %v119 = vld [vmem:[%s1 + $0xe4] sm:$0xf]
    %v120 = vld [vmem:[%s1 + $0xe8] sm:$0xf]
    %v121 = vld [vmem:[%s1 + $0xec] sm:$0xf]
    %v122 = vld [vmem:[%s1 + $0xf0] sm:$0xf]
    %v123 = vld [vmem:[%s1 + $0xf4] sm:$0xf]
    %v124 = vld [vmem:[%s1 + $0xf8] sm:$0xf]
    %v125 = vld [vmem:[%s1 + $0xfc] sm:$0xf]
    %v126 = vld [vmem:[%s1 + $0x100] sm:$0xf]
    %v127 = vld [vmem:[%s1 + $0x104] sm:$0xf]
    %v128 = vld [vmem:[%s1 + $0x108] sm:$0xf]
    %v129 = vld [vmem:[%s1 + $0x10c] sm:$0xf]
    %v130 = vld [vmem:[%s1 + $0x110] sm:$0xf]
    %v131 = vld [vmem:[%s1 + $0x114] sm:$0xf]
    %v132 = vld [vmem:[%s1 + $0x118] sm:$0xf]
    %v133 = vld [vmem:[%s1 + $0x11c] sm:$0xf]
    %v134 = vld [vmem:[%s1 + $0x120] sm:$0xf]
    %v135 = vld [vmem:[%s1 + $0x124] sm:$0xf]
    %v136 = vld [vmem:[%s1 + $0x128] sm:$0xf]
    %v137 = vld [vmem:[%s1 + $0x12c] sm:$0xf]
    %v138 = vld [vmem:[%s1 + $0x130] sm:$0xf]
    %v139 = vld [vmem:[%s1 + $0x134] sm:$0xf]
    %v140 = vld [vmem:[%s1 + $0x138] sm:$0xf]
    %v141 = vld [vmem:[%s1 + $0x13c] sm:$0xf]
    %v142 = vld [vmem:[%s1 + $0x140] sm:$0xf]
    %v143 = vld [vmem:[%s1 + $0x144] sm:$0xf]
    %v144 = vld [vmem:[%s1 + $0x148] sm:$0xf]
    %v145 = vld [vmem:[%s1 + $0x14c] sm:$0xf]
    %v146 = vld [vmem:[%s1 + $0x150] sm:$0xf]
    %v147 = vld [vmem:[%s1 + $0x154] sm:$0xf]
    %v148 = vld [vmem:[%s1 + $0x158] sm:$0xf]
    %v149 = vld [vmem:[%s1 + $0x15c] sm:$0xf]
    %v150 = vld [vmem:[%s1 + $0x160] sm:$0xf]
    %v151 = vld [vmem:[%s1 + $0x164] sm:$0xf]
    %v152 = vld [vmem:[%s1 + $0x168] sm:$0xf]
    %v153 = vld [vmem:[%s1 + $0x16c] sm:$0xf]
    %v154 = vld [vmem:[%s1 + $0x170] sm:$0xf]
    %v155 = vld [vmem:[%s1 + $0x174] sm:$0xf]
    %v156 = vld [vmem:[%s1 + $0x178] sm:$0xf]
    %v157 = vld [vmem:[%s1 + $0x17c] sm:$0xf]
    %v158 = vld [vmem:[%s1 + $0x180] sm:$0xf]
    %v159 = vld [vmem:[%s1 + $0x184] sm:$0xf]
    %v160 = vld [vmem:[%s2] sm:$0x1]
    %v162 = vlaneseq
    %v163 = vshrl.u32 %v162, 7
    %v164 = vsub.s32 0, %v163
    %v165 = vrot.slane %v160, %v164
    %v183 = vunpack.c.l.b16 %v46
    %v184 = vunpack.c.h.b16 %v46
    %v185 = vunpack.c.l.b16 %v47
    %v186 = vunpack.c.h.b16 %v47
    %v187 = vunpack.c.l.b16 %v48
    %v188 = vunpack.c.h.b16 %v48
    %v189 = vunpack.c.l.b16 %v49
    %v190 = vunpack.c.l.b16 %v50
    %v191 = vunpack.c.h.b16 %v50
    %v192 = vunpack.c.l.b16 %v51
    %v193 = vunpack.c.h.b16 %v51
    %v194 = vunpack.c.l.b16 %v52
    %v195 = vunpack.c.h.b16 %v52
    %v196 = vunpack.c.l.b16 %v53
    %v197 = vunpack.c.l.b16 %v54
    %v198 = vunpack.c.h.b16 %v54
    %v199 = vunpack.c.l.b16 %v55
    %v200 = vunpack.c.h.b16 %v55
    %v201 = vunpack.c.l.b16 %v56
    %v202 = vunpack.c.h.b16 %v56
    %v203 = vunpack.c.l.b16 %v57
    %v204 = vunpack.c.l.b16 %v58
    %v205 = vunpack.c.h.b16 %v58
    %v206 = vunpack.c.l.b16 %v59
    %v207 = vunpack.c.h.b16 %v59
    %v208 = vunpack.c.l.b16 %v60
    %v209 = vunpack.c.h.b16 %v60
    %v210 = vunpack.c.l.b16 %v61
    %v211 = vpack.c.b16 %v190, %v183
    %v212 = vpack.c.b16 %v191, %v184
    %v213 = vpack.c.b16 %v192, %v185
    %v214 = vpack.c.b16 %v193, %v186
    %v215 = vpack.c.b16 %v194, %v187
    %v216 = vpack.c.b16 %v195, %v188
    %v217 = vpack.c.b16 %v196, %v189
    %v218 = vpack.c.b16 %v204, %v197
    %v219 = vpack.c.b16 %v205, %v198
    %v220 = vpack.c.b16 %v206, %v199
    %v221 = vpack.c.b16 %v207, %v200
    %v222 = vpack.c.b16 %v208, %v201
    %v223 = vpack.c.b16 %v209, %v202
    %v224 = vpack.c.b16 %v210, %v203
    %v335 = vunpack.c.l.b16 %v62
    %v336 = vunpack.c.l.b16 %v63
    %v337 = vunpack.c.l.b16 %v64
    %v338 = vunpack.c.l.b16 %v65
    %v339 = vunpack.c.l.b16 %v66
    %v340 = vunpack.c.l.b16 %v67
    %v341 = vunpack.c.l.b16 %v68
    %v342 = vunpack.c.l.b16 %v69
    %v343 = vunpack.c.l.b16 %v70
    %v344 = vunpack.c.l.b16 %v71
    %v345 = vunpack.c.l.b16 %v72
    %v346 = vunpack.c.l.b16 %v73
    %v347 = vunpack.c.l.b16 %v74
    %v348 = vunpack.c.l.b16 %v75
    %v349 = vunpack.c.l.b16 %v76
    %v350 = vunpack.c.l.b16 %v77
    %v351 = vunpack.c.l.b16 %v78
    %v352 = vunpack.c.l.b16 %v79
    %v353 = vunpack.c.l.b16 %v80
    %v354 = vunpack.c.l.b16 %v81
    %v355 = vunpack.c.l.b16 %v82
    %v356 = vunpack.c.l.b16 %v83
    %v357 = vunpack.c.l.b16 %v84
    %v358 = vunpack.c.l.b16 %v85
    %v359 = vunpack.c.l.b16 %v86
    %v360 = vunpack.c.l.b16 %v87
    %v361 = vunpack.c.l.b16 %v88
    %v362 = vunpack.c.l.b16 %v89
    %v363 = vunpack.c.l.b16 %v90
    %v364 = vunpack.c.l.b16 %v91
    %v365 = vunpack.c.l.b16 %v92
    %v366 = vunpack.c.l.b16 %v93
    %v367 = vunpack.c.l.b16 %v94
    %v368 = vunpack.c.l.b16 %v95
    %v369 = vunpack.c.l.b16 %v96
    %v370 = vunpack.c.l.b16 %v97
    %v371 = vunpack.c.l.b16 %v98
    %v372 = vunpack.c.l.b16 %v99
    %v373 = vunpack.c.l.b16 %v100
    %v374 = vunpack.c.l.b16 %v101
    %v375 = vunpack.c.l.b16 %v102
    %v376 = vunpack.c.l.b16 %v103
    %v377 = vunpack.c.l.b16 %v104
    %v378 = vunpack.c.l.b16 %v105
    %v379 = vunpack.c.l.b16 %v106
    %v380 = vunpack.c.l.b16 %v107
    %v381 = vunpack.c.l.b16 %v108
    %v382 = vunpack.c.l.b16 %v109
    %v383 = vunpack.c.l.b16 %v110
    %v384 = vunpack.c.l.b16 %v111
    %v385 = vunpack.c.l.b16 %v112
    %v386 = vunpack.c.l.b16 %v113
    %v387 = vunpack.c.l.b16 %v114
    %v388 = vunpack.c.l.b16 %v115
    %v389 = vunpack.c.l.b16 %v116
    %v390 = vunpack.c.l.b16 %v117
    %v391 = vunpack.c.l.b16 %v118
    %v392 = vunpack.c.l.b16 %v119
    %v393 = vunpack.c.l.b16 %v120
    %v394 = vunpack.c.l.b16 %v121
    %v395 = vunpack.c.l.b16 %v122
    %v396 = vunpack.c.l.b16 %v123
    %v397 = vunpack.c.l.b16 %v124
    %v398 = vunpack.c.l.b16 %v125
    %v399 = vunpack.c.l.b16 %v126
    %v400 = vunpack.c.l.b16 %v127
    %v401 = vunpack.c.l.b16 %v128
    %v402 = vunpack.c.l.b16 %v129
    %v403 = vunpack.c.l.b16 %v130
    %v404 = vunpack.c.l.b16 %v131
    %v405 = vunpack.c.l.b16 %v132
    %v406 = vunpack.c.l.b16 %v133
    %v407 = vunpack.c.l.b16 %v134
    %v408 = vunpack.c.l.b16 %v135
    %v409 = vunpack.c.l.b16 %v136
    %v410 = vunpack.c.l.b16 %v137
    %v411 = vunpack.c.l.b16 %v138
    %v412 = vunpack.c.l.b16 %v139
    %v413 = vunpack.c.l.b16 %v140
    %v414 = vunpack.c.l.b16 %v141
    %v415 = vunpack.c.l.b16 %v142
    %v416 = vunpack.c.l.b16 %v143
    %v417 = vunpack.c.l.b16 %v144
    %v418 = vunpack.c.l.b16 %v145
    %v419 = vunpack.c.l.b16 %v146
    %v420 = vunpack.c.l.b16 %v147
    %v421 = vunpack.c.l.b16 %v148
    %v422 = vunpack.c.l.b16 %v149
    %v423 = vunpack.c.l.b16 %v150
    %v424 = vunpack.c.l.b16 %v151
    %v425 = vunpack.c.l.b16 %v152
    %v426 = vunpack.c.l.b16 %v153
    %v427 = vunpack.c.l.b16 %v154
    %v428 = vunpack.c.l.b16 %v155
    %v429 = vunpack.c.l.b16 %v156
    %v430 = vunpack.c.l.b16 %v157
    %v431 = vunpack.c.l.b16 %v158
    %v432 = vunpack.c.l.b16 %v159
    %v433 = vpack.c.b16 %v336, %v335
    %v434 = vpack.c.b16 %v338, %v337
    %v435 = vpack.c.b16 %v340, %v339
    %v436 = vpack.c.b16 %v342, %v341
    %v437 = vpack.c.b16 %v344, %v343
    %v438 = vpack.c.b16 %v346, %v345
    %v439 = vpack.c.b16 %v348, %v347
    %v440 = vpack.c.b16 %v350, %v349
    %v441 = vpack.c.b16 %v352, %v351
    %v442 = vpack.c.b16 %v354, %v353
    %v443 = vpack.c.b16 %v356, %v355
    %v444 = vpack.c.b16 %v358, %v357
    %v445 = vpack.c.b16 %v360, %v359
    %v446 = vpack.c.b16 %v362, %v361
    %v447 = vpack.c.b16 %v364, %v363
    %v448 = vpack.c.b16 %v366, %v365
    %v449 = vpack.c.b16 %v368, %v367
    %v450 = vpack.c.b16 %v370, %v369
    %v451 = vpack.c.b16 %v372, %v371
    %v452 = vpack.c.b16 %v374, %v373
    %v453 = vpack.c.b16 %v376, %v375
    %v454 = vpack.c.b16 %v378, %v377
    %v455 = vpack.c.b16 %v380, %v379
    %v456 = vpack.c.b16 %v382, %v381
    %v457 = vpack.c.b16 %v384, %v383
    %v458 = vpack.c.b16 %v386, %v385
    %v459 = vpack.c.b16 %v388, %v387
    %v460 = vpack.c.b16 %v390, %v389
    %v461 = vpack.c.b16 %v392, %v391
    %v462 = vpack.c.b16 %v394, %v393
    %v463 = vpack.c.b16 %v396, %v395
    %v464 = vpack.c.b16 %v398, %v397
    %v465 = vpack.c.b16 %v400, %v399
    %v466 = vpack.c.b16 %v402, %v401
    %v467 = vpack.c.b16 %v404, %v403
    %v468 = vpack.c.b16 %v406, %v405
    %v469 = vpack.c.b16 %v408, %v407
    %v470 = vpack.c.b16 %v410, %v409
    %v471 = vpack.c.b16 %v412, %v411
    %v472 = vpack.c.b16 %v414, %v413
    %v473 = vpack.c.b16 %v416, %v415
    %v474 = vpack.c.b16 %v418, %v417
    %v475 = vpack.c.b16 %v420, %v419
    %v476 = vpack.c.b16 %v422, %v421
    %v477 = vpack.c.b16 %v424, %v423
    %v478 = vpack.c.b16 %v426, %v425
    %v479 = vpack.c.b16 %v428, %v427
    %v480 = vpack.c.b16 %v430, %v429
    %v481 = vpack.c.b16 %v432, %v431
    %vm531 = vcmask 130048
    %v533 = vsel %vm531, %v217, 0
    %v536 = vsel %vm531, %v224, 0
    %538 = vmatprep.subr.bf16.mxu0 0
    %539 = vmatpush1.bf16.msra.mxu0 %v433
    %540 = vmatprep.subr.bf16.mxu0 0
    %541 = vmatpush1.bf16.msra.mxu0 %v434
    %542 = vmatprep.subr.bf16.mxu0 0
    %543 = vmatpush1.bf16.msra.mxu0 %v435
    %544 = vmatprep.subr.bf16.mxu0 0
    %545 = vmatpush1.bf16.msra.mxu0 %v436
    %546 = vmatprep.subr.bf16.mxu0 0
    %547 = vmatpush1.bf16.msra.mxu0 %v437
    %548 = vmatprep.subr.bf16.mxu0 0
    %549 = vmatpush1.bf16.msra.mxu0 %v438
    %550 = vmatprep.subr.bf16.mxu0 0
    %551 = vmatpush1.bf16.msra.mxu0 %v439
    %552 = vmatprep.subr.bf16.mxu0 0
    %553 = vmatpush1.bf16.msra.mxu0 %v440
    %554 = vmatprep.subr.bf16.mxu0 0
    %555 = vmatpush1.bf16.msra.mxu0 %v441
    %556 = vmatprep.subr.bf16.mxu0 0
    %557 = vmatpush1.bf16.msra.mxu0 %v442
    %558 = vmatprep.subr.bf16.mxu0 0
    %559 = vmatpush1.bf16.msra.mxu0 %v443
    %560 = vmatprep.subr.bf16.mxu0 0
    %561 = vmatpush1.bf16.msra.mxu0 %v444
    %562 = vmatprep.subr.bf16.mxu0 0
    %563 = vmatpush1.bf16.msra.mxu0 %v445
    %564 = vmatprep.subr.bf16.mxu0 0
    %565 = vmatpush1.bf16.msra.mxu0 %v446
    %566 = vmatprep.subr.bf16.mxu0 0
    %567 = vmatpush1.bf16.msra.mxu0 %v447
    %568 = vmatprep.subr.bf16.mxu0 0
    %569 = vmatpush1.bf16.msra.mxu0 %v448
    %570 = vmatprep.mubr.bf16.mxu0 %v212
    %571 = vmatmul.mubr.bf16.gmra.mrb[0].mxu0 %v211
    %v572 = vpop.f32.mrb[0].mxu0
    %v573 = vadd.f32 %v165, %v572
    %v574 = vpop.f32.mrb[0].mxu0
    %v575 = vpop.f32.mrb[0].mxu0
    %v576 = vadd.f32 %v165, %v575
    %v577 = vpop.f32.mrb[0].mxu0
    %578 = vmatprep.mubr.bf16.mxu0 %v219
    %579 = vmatmul.mubr.bf16.gmra.mrb[0].mxu0 %v218
    %v580 = vpop.f32.mrb[0].mxu0
    %v581 = vadd.f32 %v165, %v580
    %v582 = vpop.f32.mrb[0].mxu0
    %v583 = vpop.f32.mrb[0].mxu0
    %v584 = vadd.f32 %v165, %v583
    %v585 = vpop.f32.mrb[0].mxu0
    %586 = vdwg.mxu0
    %587 = vmatprep.subr.bf16.mxu0 0
    %588 = vmatpush1.bf16.msra.mxu0 %v449
    %589 = vmatprep.subr.bf16.mxu0 0
    %590 = vmatpush1.bf16.msra.mxu0 %v450
    %591 = vmatprep.subr.bf16.mxu0 0
    %592 = vmatpush1.bf16.msra.mxu0 %v451
    %593 = vmatprep.subr.bf16.mxu0 0
    %594 = vmatpush1.bf16.msra.mxu0 %v452
    %595 = vmatprep.subr.bf16.mxu0 0
    %596 = vmatpush1.bf16.msra.mxu0 %v453
    %597 = vmatprep.subr.bf16.mxu0 0
    %598 = vmatpush1.bf16.msra.mxu0 %v454
    %599 = vmatprep.subr.bf16.mxu0 0
    %600 = vmatpush1.bf16.msra.mxu0 %v455
    %601 = vmatprep.subr.bf16.mxu0 0
    %602 = vmatpush1.bf16.msra.mxu0 %v456
    %603 = vmatprep.subr.bf16.mxu0 0
    %604 = vmatpush1.bf16.msra.mxu0 %v457
    %605 = vmatprep.subr.bf16.mxu0 0
    %606 = vmatpush1.bf16.msra.mxu0 %v458
    %607 = vmatprep.subr.bf16.mxu0 0
    %608 = vmatpush1.bf16.msra.mxu0 %v459
    %609 = vmatprep.subr.bf16.mxu0 0
    %610 = vmatpush1.bf16.msra.mxu0 %v460
    %611 = vmatprep.subr.bf16.mxu0 0
    %612 = vmatpush1.bf16.msra.mxu0 %v461
    %613 = vmatprep.subr.bf16.mxu0 0
    %614 = vmatpush1.bf16.msra.mxu0 %v462
    %615 = vmatprep.subr.bf16.mxu0 0
    %616 = vmatpush1.bf16.msra.mxu0 %v463
    %617 = vmatprep.subr.bf16.mxu0 0
    %618 = vmatpush1.bf16.msra.mxu0 %v464
    %619 = vmatprep.mubr.bf16.mxu0 %v214
    %620 = vmatmul.mubr.bf16.gmra.mrb[0].mxu0 %v213
    %v621 = vpop.f32.mrb[0].mxu0
    %v622 = vadd.f32 %v573, %v621
    %v623 = vpop.f32.mrb[0].mxu0
    %v624 = vpop.f32.mrb[0].mxu0
    %v625 = vadd.f32 %v576, %v624
    %v626 = vpop.f32.mrb[0].mxu0
    %627 = vmatprep.mubr.bf16.mxu0 %v221
    %628 = vmatmul.mubr.bf16.gmra.mrb[0].mxu0 %v220
    %v629 = vpop.f32.mrb[0].mxu0
    %v630 = vadd.f32 %v581, %v629
    %v631 = vpop.f32.mrb[0].mxu0
    %v632 = vpop.f32.mrb[0].mxu0
    %v633 = vadd.f32 %v584, %v632
    %v634 = vpop.f32.mrb[0].mxu0
    %635 = vdwg.mxu0
    %636 = vmatprep.subr.bf16.mxu0 0
    %637 = vmatpush1.bf16.msra.mxu0 %v465
    %638 = vmatprep.subr.bf16.mxu0 0
    %639 = vmatpush1.bf16.msra.mxu0 %v466
    %640 = vmatprep.subr.bf16.mxu0 0
    %641 = vmatpush1.bf16.msra.mxu0 %v467
    %642 = vmatprep.subr.bf16.mxu0 0
    %643 = vmatpush1.bf16.msra.mxu0 %v468
    %644 = vmatprep.subr.bf16.mxu0 0
    %645 = vmatpush1.bf16.msra.mxu0 %v469
    %646 = vmatprep.subr.bf16.mxu0 0
    %647 = vmatpush1.bf16.msra.mxu0 %v470
    %648 = vmatprep.subr.bf16.mxu0 0
    %649 = vmatpush1.bf16.msra.mxu0 %v471
    %650 = vmatprep.subr.bf16.mxu0 0
    %651 = vmatpush1.bf16.msra.mxu0 %v472
    %652 = vmatprep.subr.bf16.mxu0 0
    %653 = vmatpush1.bf16.msra.mxu0 %v473
    %654 = vmatprep.subr.bf16.mxu0 0
    %655 = vmatpush1.bf16.msra.mxu0 %v474
    %656 = vmatprep.subr.bf16.mxu0 0
    %657 = vmatpush1.bf16.msra.mxu0 %v475
    %658 = vmatprep.subr.bf16.mxu0 0
    %659 = vmatpush1.bf16.msra.mxu0 %v476
    %660 = vmatprep.subr.bf16.mxu0 0
    %661 = vmatpush1.bf16.msra.mxu0 %v477
    %662 = vmatprep.subr.bf16.mxu0 0
    %663 = vmatpush1.bf16.msra.mxu0 %v478
    %664 = vmatprep.subr.bf16.mxu0 0
    %665 = vmatpush1.bf16.msra.mxu0 %v479
    %666 = vmatprep.subr.bf16.mxu0 0
    %667 = vmatpush1.bf16.msra.mxu0 %v480
    %668 = vmatprep.mubr.bf16.mxu0 %v216
    %669 = vmatmul.mubr.bf16.gmra.mrb[0].mxu0 %v215
    %v670 = vpop.f32.mrb[0].mxu0
    %v671 = vadd.f32 %v622, %v670
    %v672 = vpop.f32.mrb[0].mxu0
    %v673 = vpop.f32.mrb[0].mxu0
    %v674 = vadd.f32 %v625, %v673
    %v675 = vpop.f32.mrb[0].mxu0
    %676 = vmatprep.mubr.bf16.mxu0 %v223
    %677 = vmatmul.mubr.bf16.gmra.mrb[0].mxu0 %v222
    %v678 = vpop.f32.mrb[0].mxu0
    %v679 = vadd.f32 %v630, %v678
    %v680 = vpop.f32.mrb[0].mxu0
    %v681 = vpop.f32.mrb[0].mxu0
    %v682 = vadd.f32 %v633, %v681
    %v683 = vpop.f32.mrb[0].mxu0
    %684 = vdwg.mxu0
    %685 = vmatprep.subr.bf16.mxu0 0
    %686 = vmatpush1.bf16.msra.mxu0 %v481
    %687 = vmatprep.subr.bf16.mxu0 0
    %688 = vmatpush1.bf16.msra.mxu0 0
    %689 = vmatprep.subr.bf16.mxu0 0
    %690 = vmatpush1.bf16.msra.mxu0 0
    %691 = vmatprep.subr.bf16.mxu0 0
    %692 = vmatpush1.bf16.msra.mxu0 0
    %693 = vmatprep.subr.bf16.mxu0 0
    %694 = vmatpush1.bf16.msra.mxu0 0
    %695 = vmatprep.subr.bf16.mxu0 0
    %696 = vmatpush1.bf16.msra.mxu0 0
    %697 = vmatprep.subr.bf16.mxu0 0
    %698 = vmatpush1.bf16.msra.mxu0 0
    %699 = vmatprep.subr.bf16.mxu0 0
    %700 = vmatpush1.bf16.msra.mxu0 0
    %701 = vmatprep.subr.bf16.mxu0 0
    %702 = vmatpush1.bf16.msra.mxu0 0
    %703 = vmatprep.subr.bf16.mxu0 0
    %704 = vmatpush1.bf16.msra.mxu0 0
    %705 = vmatprep.subr.bf16.mxu0 0
    %706 = vmatpush1.bf16.msra.mxu0 0
    %707 = vmatprep.subr.bf16.mxu0 0
    %708 = vmatpush1.bf16.msra.mxu0 0
    %709 = vmatprep.subr.bf16.mxu0 0
    %710 = vmatpush1.bf16.msra.mxu0 0
    %711 = vmatprep.subr.bf16.mxu0 0
    %712 = vmatpush1.bf16.msra.mxu0 0
    %713 = vmatprep.subr.bf16.mxu0 0
    %714 = vmatpush1.bf16.msra.mxu0 0
    %715 = vmatprep.subr.bf16.mxu0 0
    %716 = vmatpush1.bf16.msra.mxu0 0
    %717 = vmatprep.mubr.bf16.mxu0 0
    %718 = vmatmul.mubr.bf16.gmra.mrb[0].mxu0 %v533
    %v719 = vpop.f32.mrb[0].mxu0
    %v720 = vadd.f32 %v671, %v719
    %v721 = vpop.f32.mrb[0].mxu0
    %v722 = vpop.f32.mrb[0].mxu0
    %v723 = vadd.f32 %v674, %v722
    %v724 = vpop.f32.mrb[0].mxu0
    %725 = vmatprep.mubr.bf16.mxu0 0
    %726 = vmatmul.mubr.bf16.gmra.mrb[0].mxu0 %v536
    %v727 = vpop.f32.mrb[0].mxu0
    %v728 = vadd.f32 %v679, %v727
    %v729 = vpop.f32.mrb[0].mxu0
    %v730 = vpop.f32.mrb[0].mxu0
    %v731 = vadd.f32 %v682, %v730
    %v732 = vpop.f32.mrb[0].mxu0
    %733 = vdwg.mxu0
    %v734 = vtanh.pop %v720
    %v735 = vtanh.pop %v723
    %v736 = vtanh.pop %v728
    %v737 = vtanh.pop %v731
    %v738 = vpack.c.bf16 %v735, %v734
    %v739 = vpack.c.bf16 %v737, %v736
    %v740 = vld [vmem:[%s3] sm:$0xf]
    %v741 = vld [vmem:[%s3 + $0x4] sm:$0xf]
    %v742 = vld [vmem:[%s3 + $0x8] sm:$0xf]
    %v743 = vld [vmem:[%s3 + $0xc] sm:$0xf]
    %v744 = vld [vmem:[%s3 + $0x10] sm:$0xf]
    %v745 = vld [vmem:[%s3 + $0x14] sm:$0xf]
    %v746 = vld [vmem:[%s3 + $0x18] sm:$0xf]
    %v747 = vld [vmem:[%s3 + $0x1c] sm:$0xf]
    %v748 = vld [vmem:[%s3 + $0x20] sm:$0xf]
    %v749 = vld [vmem:[%s3 + $0x24] sm:$0xf]
    %v750 = vld [vmem:[%s3 + $0x28] sm:$0xf]
    %v751 = vld [vmem:[%s3 + $0x2c] sm:$0xf]
    %v752 = vld [vmem:[%s3 + $0x30] sm:$0xf]
    %v753 = vld [vmem:[%s3 + $0x34] sm:$0xf]
    %v754 = vld [vmem:[%s3 + $0x38] sm:$0xf]
    %v755 = vld [vmem:[%s3 + $0x3c] sm:$0xf]
    %v756 = vld [vmem:[%s4] sm:$0x1]
    %v758 = vlaneseq
    %v759 = vshrl.u32 %v758, 7
    %v760 = vsub.s32 0, %v759
    %v761 = vrot.slane %v756, %v760
    %v779 = vunpack.c.l.b16 %v740
    %v780 = vunpack.c.l.b16 %v741
    %v781 = vunpack.c.l.b16 %v742
    %v782 = vunpack.c.l.b16 %v743
    %v783 = vunpack.c.l.b16 %v744
    %v784 = vunpack.c.l.b16 %v745
    %v785 = vunpack.c.l.b16 %v746
    %v786 = vunpack.c.l.b16 %v747
    %v787 = vunpack.c.l.b16 %v748
    %v788 = vunpack.c.l.b16 %v749
    %v789 = vunpack.c.l.b16 %v750
    %v790 = vunpack.c.l.b16 %v751
    %v791 = vunpack.c.l.b16 %v752
    %v792 = vunpack.c.l.b16 %v753
    %v793 = vunpack.c.l.b16 %v754
    %v794 = vunpack.c.l.b16 %v755
    %v795 = vpack.c.b16 %v780, %v779
    %v796 = vpack.c.b16 %v782, %v781
    %v797 = vpack.c.b16 %v784, %v783
    %v798 = vpack.c.b16 %v786, %v785
    %v799 = vpack.c.b16 %v788, %v787
    %v800 = vpack.c.b16 %v790, %v789
    %v801 = vpack.c.b16 %v792, %v791
    %v802 = vpack.c.b16 %v794, %v793
    %811 = vmatprep.subr.bf16.mxu0 0
    %812 = vmatpush1.bf16.msra.mxu0 %v795
    %813 = vmatprep.subr.bf16.mxu0 0
    %814 = vmatpush1.bf16.msra.mxu0 %v796
    %815 = vmatprep.subr.bf16.mxu0 0
    %816 = vmatpush1.bf16.msra.mxu0 %v797
    %817 = vmatprep.subr.bf16.mxu0 0
    %818 = vmatpush1.bf16.msra.mxu0 %v798
    %819 = vmatprep.subr.bf16.mxu0 0
    %820 = vmatpush1.bf16.msra.mxu0 %v799
    %821 = vmatprep.subr.bf16.mxu0 0
    %822 = vmatpush1.bf16.msra.mxu0 %v800
    %823 = vmatprep.subr.bf16.mxu0 0
    %824 = vmatpush1.bf16.msra.mxu0 %v801
    %825 = vmatprep.subr.bf16.mxu0 0
    %826 = vmatpush1.bf16.msra.mxu0 %v802
    %827 = vmatprep.subr.bf16.mxu0 0
    %828 = vmatpush1.bf16.msra.mxu0 0
    %829 = vmatprep.subr.bf16.mxu0 0
    %830 = vmatpush1.bf16.msra.mxu0 0
    %831 = vmatprep.subr.bf16.mxu0 0
    %832 = vmatpush1.bf16.msra.mxu0 0
    %833 = vmatprep.subr.bf16.mxu0 0
    %834 = vmatpush1.bf16.msra.mxu0 0
    %835 = vmatprep.subr.bf16.mxu0 0
    %836 = vmatpush1.bf16.msra.mxu0 0
    %837 = vmatprep.subr.bf16.mxu0 0
    %838 = vmatpush1.bf16.msra.mxu0 0
    %839 = vmatprep.subr.bf16.mxu0 0
    %840 = vmatpush1.bf16.msra.mxu0 0
    %841 = vmatprep.subr.bf16.mxu0 0
    %842 = vmatpush1.bf16.msra.mxu0 0
    %843 = vmatprep.mubr.bf16.mxu0 0
    %844 = vmatmul.mubr.bf16.gmra.mrb[0].mxu0 %v738
    %v845 = vpop.f32.mrb[0].mxu0
    %v846 = vadd.f32 %v761, %v845
    %v847 = vpop.f32.mrb[0].mxu0
    %v848 = vpop.f32.mrb[0].mxu0
    %v849 = vadd.f32 %v761, %v848
    %v850 = vpop.f32.mrb[0].mxu0
    %851 = vmatprep.mubr.bf16.mxu0 0
    %852 = vmatmul.mubr.bf16.gmra.mrb[0].mxu0 %v739
    %v853 = vpop.f32.mrb[0].mxu0
    %v854 = vadd.f32 %v761, %v853
    %v855 = vpop.f32.mrb[0].mxu0
    %v856 = vpop.f32.mrb[0].mxu0
    %v857 = vadd.f32 %v761, %v856
    %v858 = vpop.f32.mrb[0].mxu0
    %859 = vdwg.mxu0
    %v860 = vtanh.pop %v846
    %v861 = vtanh.pop %v849
    %v862 = vtanh.pop %v854
    %v863 = vtanh.pop %v857
    %v864 = vpack.c.bf16 %v861, %v860
    %v865 = vpack.c.bf16 %v863, %v862
    %v866 = vld [vmem:[%s5] sm:$0xf]
    %v867 = vld [vmem:[%s5 + $0x4] sm:$0xf]
    %v868 = vld [vmem:[%s5 + $0x8] sm:$0xf]
    %v869 = vld [vmem:[%s5 + $0xc] sm:$0xf]
    %v870 = vld [vmem:[%s5 + $0x10] sm:$0xf]
    %v871 = vld [vmem:[%s5 + $0x14] sm:$0xf]
    %v872 = vld [vmem:[%s5 + $0x18] sm:$0xf]
    %v873 = vld [vmem:[%s5 + $0x1c] sm:$0xf]
    %v874 = vld [vmem:[%s6] sm:$0x1]
    %v876 = vlaneseq
    %v877 = vshrl.u32 %v876, 7
    %v878 = vsub.s32 0, %v877
    %v879 = vrot.slane %v874, %v878
    %v889 = vunpack.c.l.b16 %v866
    %v890 = vunpack.c.l.b16 %v867
    %v891 = vunpack.c.l.b16 %v868
    %v892 = vunpack.c.l.b16 %v869
    %v893 = vunpack.c.l.b16 %v870
    %v894 = vunpack.c.l.b16 %v871
    %v895 = vunpack.c.l.b16 %v872
    %v896 = vunpack.c.l.b16 %v873
    %v897 = vpack.c.b16 %v890, %v889
    %v898 = vpack.c.b16 %v892, %v891
    %v899 = vpack.c.b16 %v894, %v893
    %v900 = vpack.c.b16 %v896, %v895
    %vm905 = vcmask 523264
    %v907 = vsel %vm905, %v864, 0
    %v910 = vsel %vm905, %v865, 0
    %912 = vmatprep.subr.bf16.mxu0 0
    %913 = vmatpush1.bf16.msra.mxu0 %v897
    %914 = vmatprep.subr.bf16.mxu0 0
    %915 = vmatpush1.bf16.msra.mxu0 %v898
    %916 = vmatprep.subr.bf16.mxu0 0
    %917 = vmatpush1.bf16.msra.mxu0 %v899
    %918 = vmatprep.subr.bf16.mxu0 0
    %919 = vmatpush1.bf16.msra.mxu0 %v900
    %920 = vmatprep.subr.bf16.mxu0 0
    %921 = vmatpush1.bf16.msra.mxu0 0
    %922 = vmatprep.subr.bf16.mxu0 0
    %923 = vmatpush1.bf16.msra.mxu0 0
    %924 = vmatprep.subr.bf16.mxu0 0
    %925 = vmatpush1.bf16.msra.mxu0 0
    %926 = vmatprep.subr.bf16.mxu0 0
    %927 = vmatpush1.bf16.msra.mxu0 0
    %928 = vmatprep.subr.bf16.mxu0 0
    %929 = vmatpush1.bf16.msra.mxu0 0
    %930 = vmatprep.subr.bf16.mxu0 0
    %931 = vmatpush1.bf16.msra.mxu0 0
    %932 = vmatprep.subr.bf16.mxu0 0
    %933 = vmatpush1.bf16.msra.mxu0 0
    %934 = vmatprep.subr.bf16.mxu0 0
    %935 = vmatpush1.bf16.msra.mxu0 0
    %936 = vmatprep.subr.bf16.mxu0 0
    %937 = vmatpush1.bf16.msra.mxu0 0
    %938 = vmatprep.subr.bf16.mxu0 0
    %939 = vmatpush1.bf16.msra.mxu0 0
    %940 = vmatprep.subr.bf16.mxu0 0
    %941 = vmatpush1.bf16.msra.mxu0 0
    %942 = vmatprep.subr.bf16.mxu0 0
    %943 = vmatpush1.bf16.msra.mxu0 0
    %944 = vmatprep.mubr.bf16.mxu0 0
    %945 = vmatmul.mubr.bf16.gmra.mrb[0].mxu0 %v907
    %v946 = vpop.f32.mrb[0].mxu0
    %v947 = vadd.f32 %v879, %v946
    %v948 = vpop.f32.mrb[0].mxu0
    %v949 = vpop.f32.mrb[0].mxu0
    %v950 = vadd.f32 %v879, %v949
    %v951 = vpop.f32.mrb[0].mxu0
    %952 = vmatprep.mubr.bf16.mxu0 0
    %953 = vmatmul.mubr.bf16.gmra.mrb[0].mxu0 %v910
    %v954 = vpop.f32.mrb[0].mxu0
    %v955 = vadd.f32 %v879, %v954
    %v956 = vpop.f32.mrb[0].mxu0
    %v957 = vpop.f32.mrb[0].mxu0
    %v958 = vadd.f32 %v879, %v957
    %v959 = vpop.f32.mrb[0].mxu0
    %960 = vdwg.mxu0
    %v961 = vtanh.pop %v947
    %v962 = vtanh.pop %v950
    %v963 = vtanh.pop %v955
    %v964 = vtanh.pop %v958
    %v965 = vpack.c.bf16 %v962, %v961
    %v966 = vpack.c.bf16 %v964, %v963
    %v967 = vld [vmem:[%s7] sm:$0xf]
    %v968 = vld [vmem:[%s7 + $0x4] sm:$0x3]
    %v969 = vld [vmem:[%s8] sm:$0x1]
    %v971 = vlaneseq
    %v972 = vshrl.u32 %v971, 7
    %v973 = vsub.s32 0, %v972
    %v974 = vrot.slane %v969, %v973
    %v978 = vunpack.c.l.b16 %v967
    %v979 = vunpack.c.l.b16 %v968
    %v980 = vpack.c.b16 %v979, %v978
    %vm981 = vcmask 97280
    %v983 = vsel %vm981, %v965, 0
    %v986 = vsel %vm981, %v966, 0
    %vm988 = vcmask 1045504
    %v990 = vsel %vm988, %v980, 0
    %992 = vmatprep.subr.bf16.mxu0 0
    %993 = vmatpush1.bf16.msra.mxu0 %v990
    %994 = vmatprep.subr.bf16.mxu0 0
    %995 = vmatpush1.bf16.msra.mxu0 0
    %996 = vmatprep.subr.bf16.mxu0 0
    %997 = vmatpush1.bf16.msra.mxu0 0
    %998 = vmatprep.subr.bf16.mxu0 0
    %999 = vmatpush1.bf16.msra.mxu0 0
    %1000 = vmatprep.subr.bf16.mxu0 0
    %1001 = vmatpush1.bf16.msra.mxu0 0
    %1002 = vmatprep.subr.bf16.mxu0 0
    %1003 = vmatpush1.bf16.msra.mxu0 0
    %1004 = vmatprep.subr.bf16.mxu0 0
    %1005 = vmatpush1.bf16.msra.mxu0 0
    %1006 = vmatprep.subr.bf16.mxu0 0
    %1007 = vmatpush1.bf16.msra.mxu0 0
    %1008 = vmatprep.subr.bf16.mxu0 0
    %1009 = vmatpush1.bf16.msra.mxu0 0
    %1010 = vmatprep.subr.bf16.mxu0 0
    %1011 = vmatpush1.bf16.msra.mxu0 0
    %1012 = vmatprep.subr.bf16.mxu0 0
    %1013 = vmatpush1.bf16.msra.mxu0 0
    %1014 = vmatprep.subr.bf16.mxu0 0
    %1015 = vmatpush1.bf16.msra.mxu0 0
    %1016 = vmatprep.subr.bf16.mxu0 0
    %1017 = vmatpush1.bf16.msra.mxu0 0
    %1018 = vmatprep.subr.bf16.mxu0 0
    %1019 = vmatpush1.bf16.msra.mxu0 0
    %1020 = vmatprep.subr.bf16.mxu0 0
    %1021 = vmatpush1.bf16.msra.mxu0 0
    %1022 = vmatprep.subr.bf16.mxu0 0
    %1023 = vmatpush1.bf16.msra.mxu0 0
    %1024 = vmatprep.mubr.bf16.mxu0 0
    %1025 = vmatmul.mubr.bf16.gmra.mrb[0].mxu0 %v983
    %v1026 = vpop.f32.mrb[0].mxu0
    %v1027 = vadd.f32 %v974, %v1026
    %v1028 = vpop.f32.mrb[0].mxu0
    %v1029 = vpop.f32.mrb[0].mxu0
    %v1030 = vadd.f32 %v974, %v1029
    %v1031 = vpop.f32.mrb[0].mxu0
    %1032 = vmatprep.mubr.bf16.mxu0 0
    %1033 = vmatmul.mubr.bf16.gmra.mrb[0].mxu0 %v986
    %v1034 = vpop.f32.mrb[0].mxu0
    %v1035 = vadd.f32 %v974, %v1034
    %v1036 = vpop.f32.mrb[0].mxu0
    %v1037 = vpop.f32.mrb[0].mxu0
    %v1038 = vadd.f32 %v974, %v1037
    %v1039 = vpop.f32.mrb[0].mxu0
    %1040 = vdwg.mxu0
    %v1041 = vtanh.pop %v1027
    %v1042 = vtanh.pop %v1030
    %v1043 = vtanh.pop %v1035
    %v1044 = vtanh.pop %v1038
    %v1045 = vpack.c.bf16 %v1042, %v1041
    %v1046 = vpack.c.bf16 %v1044, %v1043
    %v1047 = vld [vmem:[%s9] sm:$0xf]
    %v1048 = vld [vmem:[%s9 + $0x4] sm:$0xf]
    %v1049 = vld [vmem:[%s9 + $0x8] sm:$0xf]
    %v1050 = vld [vmem:[%s9 + $0xc] sm:$0xf]
    %v1051 = vld [vmem:[%s9 + $0x10] sm:$0xf]
    %v1052 = vld [vmem:[%s9 + $0x14] sm:$0xf]
    %v1053 = vld [vmem:[%s9 + $0x18] sm:$0xf]
    %v1054 = vld [vmem:[%s9 + $0x1c] sm:$0xf]
    %v1055 = vld [vmem:[%s10] sm:$0x1]
    %v1057 = vlaneseq
    %v1058 = vshrl.u32 %v1057, 7
    %v1059 = vsub.s32 0, %v1058
    %v1060 = vrot.slane %v1055, %v1059
    %v1070 = vunpack.c.l.b16 %v1047
    %v1071 = vunpack.c.l.b16 %v1048
    %v1072 = vunpack.c.l.b16 %v1049
    %v1073 = vunpack.c.l.b16 %v1050
    %v1074 = vunpack.c.l.b16 %v1051
    %v1075 = vunpack.c.l.b16 %v1052
    %v1076 = vunpack.c.l.b16 %v1053
    %v1077 = vunpack.c.l.b16 %v1054
    %v1078 = vpack.c.b16 %v1071, %v1070
    %v1079 = vpack.c.b16 %v1073, %v1072
    %v1080 = vpack.c.b16 %v1075, %v1074
    %v1081 = vpack.c.b16 %v1077, %v1076
    %v1087 = vsel %vm905, %v1045, 0
    %v1090 = vsel %vm905, %v1046, 0
    %1092 = vmatprep.subr.bf16.mxu0 0
    %1093 = vmatpush1.bf16.msra.mxu0 %v1078
    %1094 = vmatprep.subr.bf16.mxu0 0
    %1095 = vmatpush1.bf16.msra.mxu0 %v1079
    %1096 = vmatprep.subr.bf16.mxu0 0
    %1097 = vmatpush1.bf16.msra.mxu0 %v1080
    %1098 = vmatprep.subr.bf16.mxu0 0
    %1099 = vmatpush1.bf16.msra.mxu0 %v1081
    %1100 = vmatprep.subr.bf16.mxu0 0
    %1101 = vmatpush1.bf16.msra.mxu0 0
    %1102 = vmatprep.subr.bf16.mxu0 0
    %1103 = vmatpush1.bf16.msra.mxu0 0
    %1104 = vmatprep.subr.bf16.mxu0 0
    %1105 = vmatpush1.bf16.msra.mxu0 0
    %1106 = vmatprep.subr.bf16.mxu0 0
    %1107 = vmatpush1.bf16.msra.mxu0 0
    %1108 = vmatprep.subr.bf16.mxu0 0
    %1109 = vmatpush1.bf16.msra.mxu0 0
    %1110 = vmatprep.subr.bf16.mxu0 0
    %1111 = vmatpush1.bf16.msra.mxu0 0
    %1112 = vmatprep.subr.bf16.mxu0 0
    %1113 = vmatpush1.bf16.msra.mxu0 0
    %1114 = vmatprep.subr.bf16.mxu0 0
    %1115 = vmatpush1.bf16.msra.mxu0 0
    %1116 = vmatprep.subr.bf16.mxu0 0
    %1117 = vmatpush1.bf16.msra.mxu0 0
    %1118 = vmatprep.subr.bf16.mxu0 0
    %1119 = vmatpush1.bf16.msra.mxu0 0
    %1120 = vmatprep.subr.bf16.mxu0 0
    %1121 = vmatpush1.bf16.msra.mxu0 0
    %1122 = vmatprep.subr.bf16.mxu0 0
    %1123 = vmatpush1.bf16.msra.mxu0 0
    %1124 = vmatprep.mubr.bf16.mxu0 0
    %1125 = vmatmul.mubr.bf16.gmra.mrb[0].mxu0 %v1087
    %v1126 = vpop.f32.mrb[0].mxu0
    %v1127 = vadd.f32 %v1060, %v1126
    %v1128 = vpop.f32.mrb[0].mxu0
    %v1129 = vpop.f32.mrb[0].mxu0
    %v1130 = vadd.f32 %v1060, %v1129
    %v1131 = vpop.f32.mrb[0].mxu0
    %1132 = vmatprep.mubr.bf16.mxu0 0
    %1133 = vmatmul.mubr.bf16.gmra.mrb[0].mxu0 %v1090
    %v1134 = vpop.f32.mrb[0].mxu0
    %v1135 = vadd.f32 %v1060, %v1134
    %v1136 = vpop.f32.mrb[0].mxu0
    %v1137 = vpop.f32.mrb[0].mxu0
    %v1138 = vadd.f32 %v1060, %v1137
    %v1139 = vpop.f32.mrb[0].mxu0
    %1140 = vdwg.mxu0
    %v1141 = vtanh.pop %v1127
    %v1142 = vtanh.pop %v1130
    %v1143 = vtanh.pop %v1135
    %v1144 = vtanh.pop %v1138
    %v1145 = vpack.c.bf16 %v1142, %v1141
    %v1146 = vpack.c.bf16 %v1144, %v1143
    %v1147 = vld [vmem:[%s11] sm:$0xff]
    %v1148 = vld [vmem:[%s11 + $0x8] sm:$0xff]
    %v1149 = vld [vmem:[%s11 + $0x10] sm:$0xff]
    %v1150 = vld [vmem:[%s11 + $0x18] sm:$0xf]
    %v1151 = vld [vmem:[%s11 + $0x1c] sm:$0xff]
    %v1152 = vld [vmem:[%s11 + $0x24] sm:$0xff]
    %v1153 = vld [vmem:[%s11 + $0x2c] sm:$0xff]
    %v1154 = vld [vmem:[%s11 + $0x34] sm:$0xf]
    %v1155 = vld [vmem:[%s11 + $0x38] sm:$0xff]
    %v1156 = vld [vmem:[%s11 + $0x40] sm:$0xff]
    %v1157 = vld [vmem:[%s11 + $0x48] sm:$0xff]
    %v1158 = vld [vmem:[%s11 + $0x50] sm:$0xf]
    %v1159 = vld [vmem:[%s11 + $0x54] sm:$0xff]
    %v1160 = vld [vmem:[%s11 + $0x5c] sm:$0xff]
    %v1161 = vld [vmem:[%s11 + $0x64] sm:$0xff]
    %v1162 = vld [vmem:[%s11 + $0x6c] sm:$0xf]
    %v1163 = vld [vmem:[%s11 + $0x70] sm:$0xff]
    %v1164 = vld [vmem:[%s11 + $0x78] sm:$0xff]
    %v1165 = vld [vmem:[%s11 + $0x80] sm:$0xff]
    %v1166 = vld [vmem:[%s11 + $0x88] sm:$0xf]
    %v1167 = vld [vmem:[%s11 + $0x8c] sm:$0xff]
    %v1168 = vld [vmem:[%s11 + $0x94] sm:$0xff]
    %v1169 = vld [vmem:[%s11 + $0x9c] sm:$0xff]
    %v1170 = vld [vmem:[%s11 + $0xa4] sm:$0xf]
    %v1171 = vld [vmem:[%s11 + $0xa8] sm:$0xff]
    %v1172 = vld [vmem:[%s11 + $0xb0] sm:$0xff]
    %v1173 = vld [vmem:[%s11 + $0xb8] sm:$0xff]
    %v1174 = vld [vmem:[%s11 + $0xc0] sm:$0xf]
    %v1175 = vld [vmem:[%s11 + $0xc4] sm:$0xff]
    %v1176 = vld [vmem:[%s11 + $0xcc] sm:$0xff]
    %v1177 = vld [vmem:[%s11 + $0xd4] sm:$0xff]
    %v1178 = vld [vmem:[%s11 + $0xdc] sm:$0xf]
    %v1179 = vld [vmem:[%s11 + $0xe0] sm:$0xff]
    %v1180 = vld [vmem:[%s11 + $0xe8] sm:$0xff]
    %v1181 = vld [vmem:[%s11 + $0xf0] sm:$0xff]
    %v1182 = vld [vmem:[%s11 + $0xf8] sm:$0xf]
    %v1183 = vld [vmem:[%s11 + $0xfc] sm:$0xff]
    %v1184 = vld [vmem:[%s11 + $0x104] sm:$0xff]
    %v1185 = vld [vmem:[%s11 + $0x10c] sm:$0xff]
    %v1186 = vld [vmem:[%s11 + $0x114] sm:$0xf]
    %v1187 = vld [vmem:[%s11 + $0x118] sm:$0xff]
    %v1188 = vld [vmem:[%s11 + $0x120] sm:$0xff]
    %v1189 = vld [vmem:[%s11 + $0x128] sm:$0xff]
    %v1190 = vld [vmem:[%s11 + $0x130] sm:$0xf]
    %v1191 = vld [vmem:[%s11 + $0x134] sm:$0xff]
    %v1192 = vld [vmem:[%s11 + $0x13c] sm:$0xff]
    %v1193 = vld [vmem:[%s11 + $0x144] sm:$0xff]
    %v1194 = vld [vmem:[%s11 + $0x14c] sm:$0xf]
    %v1195 = vld [vmem:[%s11 + $0x150] sm:$0xff]
    %v1196 = vld [vmem:[%s11 + $0x158] sm:$0xff]
    %v1197 = vld [vmem:[%s11 + $0x160] sm:$0xff]
    %v1198 = vld [vmem:[%s11 + $0x168] sm:$0xf]
    %v1199 = vld [vmem:[%s11 + $0x16c] sm:$0xff]
    %v1200 = vld [vmem:[%s11 + $0x174] sm:$0xff]
    %v1201 = vld [vmem:[%s11 + $0x17c] sm:$0xff]
    %v1202 = vld [vmem:[%s11 + $0x184] sm:$0xf]
    %v1203 = vld [vmem:[%s11 + $0x188] sm:$0xff]
    %v1204 = vld [vmem:[%s11 + $0x190] sm:$0xff]
    %v1205 = vld [vmem:[%s11 + $0x198] sm:$0xff]
    %v1206 = vld [vmem:[%s11 + $0x1a0] sm:$0xf]
    %v1207 = vld [vmem:[%s11 + $0x1a4] sm:$0xff]
    %v1208 = vld [vmem:[%s11 + $0x1ac] sm:$0xff]
    %v1209 = vld [vmem:[%s11 + $0x1b4] sm:$0xff]
    %v1210 = vld [vmem:[%s11 + $0x1bc] sm:$0xf]
    %v1211 = vld [vmem:[%s12] sm:$0x7f]
    %v1213 = vlaneseq
    %v1214 = vshrl.u32 %v1213, 7
    %v1215 = vsub.s32 0, %v1214
    %v1216 = vrot.slane %v1211, %v1215
    %v1217 = vlaneseq
    %v1218 = vshrl.u32 %v1217, 7
    %v1219 = vsub.s32 1, %v1218
    %v1220 = vrot.slane %v1211, %v1219
    %v1221 = vlaneseq
    %v1222 = vshrl.u32 %v1221, 7
    %v1223 = vsub.s32 2, %v1222
    %v1224 = vrot.slane %v1211, %v1223
    %v1225 = vlaneseq
    %v1226 = vshrl.u32 %v1225, 7
    %v1227 = vsub.s32 3, %v1226
    %v1228 = vrot.slane %v1211, %v1227
    %v1229 = vlaneseq
    %v1230 = vshrl.u32 %v1229, 7
    %v1231 = vsub.s32 4, %v1230
    %v1232 = vrot.slane %v1211, %v1231
    %v1233 = vlaneseq
    %v1234 = vshrl.u32 %v1233, 7
    %v1235 = vsub.s32 5, %v1234
    %v1236 = vrot.slane %v1211, %v1235
    %v1237 = vlaneseq
    %v1238 = vshrl.u32 %v1237, 7
    %v1239 = vsub.s32 6, %v1238
    %v1240 = vrot.slane %v1211, %v1239
    %v1312 = vunpack.c.l.b16 %v1147
    %v1313 = vunpack.c.h.b16 %v1147
    %v1314 = vunpack.c.l.b16 %v1148
    %v1315 = vunpack.c.h.b16 %v1148
    %v1316 = vunpack.c.l.b16 %v1149
    %v1317 = vunpack.c.h.b16 %v1149
    %v1318 = vunpack.c.l.b16 %v1150
    %v1319 = vunpack.c.l.b16 %v1151
    %v1320 = vunpack.c.h.b16 %v1151
    %v1321 = vunpack.c.l.b16 %v1152
    %v1322 = vunpack.c.h.b16 %v1152
    %v1323 = vunpack.c.l.b16 %v1153
    %v1324 = vunpack.c.h.b16 %v1153
    %v1325 = vunpack.c.l.b16 %v1154
    %v1326 = vunpack.c.l.b16 %v1155
    %v1327 = vunpack.c.h.b16 %v1155
    %v1328 = vunpack.c.l.b16 %v1156
    %v1329 = vunpack.c.h.b16 %v1156
    %v1330 = vunpack.c.l.b16 %v1157
    %v1331 = vunpack.c.h.b16 %v1157
    %v1332 = vunpack.c.l.b16 %v1158
    %v1333 = vunpack.c.l.b16 %v1159
    %v1334 = vunpack.c.h.b16 %v1159
    %v1335 = vunpack.c.l.b16 %v1160
    %v1336 = vunpack.c.h.b16 %v1160
    %v1337 = vunpack.c.l.b16 %v1161
    %v1338 = vunpack.c.h.b16 %v1161
    %v1339 = vunpack.c.l.b16 %v1162
    %v1340 = vunpack.c.l.b16 %v1163
    %v1341 = vunpack.c.h.b16 %v1163
    %v1342 = vunpack.c.l.b16 %v1164
    %v1343 = vunpack.c.h.b16 %v1164
    %v1344 = vunpack.c.l.b16 %v1165
    %v1345 = vunpack.c.h.b16 %v1165
    %v1346 = vunpack.c.l.b16 %v1166
    %v1347 = vunpack.c.l.b16 %v1167
    %v1348 = vunpack.c.h.b16 %v1167
    %v1349 = vunpack.c.l.b16 %v1168
    %v1350 = vunpack.c.h.b16 %v1168
    %v1351 = vunpack.c.l.b16 %v1169
    %v1352 = vunpack.c.h.b16 %v1169
    %v1353 = vunpack.c.l.b16 %v1170
    %v1354 = vunpack.c.l.b16 %v1171
    %v1355 = vunpack.c.h.b16 %v1171
    %v1356 = vunpack.c.l.b16 %v1172
    %v1357 = vunpack.c.h.b16 %v1172
    %v1358 = vunpack.c.l.b16 %v1173
    %v1359 = vunpack.c.h.b16 %v1173
    %v1360 = vunpack.c.l.b16 %v1174
    %v1361 = vunpack.c.l.b16 %v1175
    %v1362 = vunpack.c.h.b16 %v1175
    %v1363 = vunpack.c.l.b16 %v1176
    %v1364 = vunpack.c.h.b16 %v1176
    %v1365 = vunpack.c.l.b16 %v1177
    %v1366 = vunpack.c.h.b16 %v1177
    %v1367 = vunpack.c.l.b16 %v1178
    %v1368 = vunpack.c.l.b16 %v1179
    %v1369 = vunpack.c.h.b16 %v1179
    %v1370 = vunpack.c.l.b16 %v1180
    %v1371 = vunpack.c.h.b16 %v1180
    %v1372 = vunpack.c.l.b16 %v1181
    %v1373 = vunpack.c.h.b16 %v1181
    %v1374 = vunpack.c.l.b16 %v1182
    %v1375 = vunpack.c.l.b16 %v1183
    %v1376 = vunpack.c.h.b16 %v1183
    %v1377 = vunpack.c.l.b16 %v1184
    %v1378 = vunpack.c.h.b16 %v1184
    %v1379 = vunpack.c.l.b16 %v1185
    %v1380 = vunpack.c.h.b16 %v1185
    %v1381 = vunpack.c.l.b16 %v1186
    %v1382 = vunpack.c.l.b16 %v1187
    %v1383 = vunpack.c.h.b16 %v1187
    %v1384 = vunpack.c.l.b16 %v1188
    %v1385 = vunpack.c.h.b16 %v1188
    %v1386 = vunpack.c.l.b16 %v1189
    %v1387 = vunpack.c.h.b16 %v1189
    %v1388 = vunpack.c.l.b16 %v1190
    %v1389 = vunpack.c.l.b16 %v1191
    %v1390 = vunpack.c.h.b16 %v1191
    %v1391 = vunpack.c.l.b16 %v1192
    %v1392 = vunpack.c.h.b16 %v1192
    %v1393 = vunpack.c.l.b16 %v1193
    %v1394 = vunpack.c.h.b16 %v1193
    %v1395 = vunpack.c.l.b16 %v1194
    %v1396 = vunpack.c.l.b16 %v1195
    %v1397 = vunpack.c.h.b16 %v1195
    %v1398 = vunpack.c.l.b16 %v1196
    %v1399 = vunpack.c.h.b16 %v1196
    %v1400 = vunpack.c.l.b16 %v1197
    %v1401 = vunpack.c.h.b16 %v1197
    %v1402 = vunpack.c.l.b16 %v1198
    %v1403 = vunpack.c.l.b16 %v1199
    %v1404 = vunpack.c.h.b16 %v1199
    %v1405 = vunpack.c.l.b16 %v1200
    %v1406 = vunpack.c.h.b16 %v1200
    %v1407 = vunpack.c.l.b16 %v1201
    %v1408 = vunpack.c.h.b16 %v1201
    %v1409 = vunpack.c.l.b16 %v1202
    %v1410 = vunpack.c.l.b16 %v1203
    %v1411 = vunpack.c.h.b16 %v1203
    %v1412 = vunpack.c.l.b16 %v1204
    %v1413 = vunpack.c.h.b16 %v1204
    %v1414 = vunpack.c.l.b16 %v1205
    %v1415 = vunpack.c.h.b16 %v1205
    %v1416 = vunpack.c.l.b16 %v1206
    %v1417 = vunpack.c.l.b16 %v1207
    %v1418 = vunpack.c.h.b16 %v1207
    %v1419 = vunpack.c.l.b16 %v1208
    %v1420 = vunpack.c.h.b16 %v1208
    %v1421 = vunpack.c.l.b16 %v1209
    %v1422 = vunpack.c.h.b16 %v1209
    %v1423 = vunpack.c.l.b16 %v1210
    %v1424 = vpack.c.b16 %v1319, %v1312
    %v1425 = vpack.c.b16 %v1320, %v1313
    %v1426 = vpack.c.b16 %v1321, %v1314
    %v1427 = vpack.c.b16 %v1322, %v1315
    %v1428 = vpack.c.b16 %v1323, %v1316
    %v1429 = vpack.c.b16 %v1324, %v1317
    %v1430 = vpack.c.b16 %v1325, %v1318
    %v1431 = vpack.c.b16 %v1333, %v1326
    %v1432 = vpack.c.b16 %v1334, %v1327
    %v1433 = vpack.c.b16 %v1335, %v1328
    %v1434 = vpack.c.b16 %v1336, %v1329
    %v1435 = vpack.c.b16 %v1337, %v1330
    %v1436 = vpack.c.b16 %v1338, %v1331
    %v1437 = vpack.c.b16 %v1339, %v1332
    %v1438 = vpack.c.b16 %v1347, %v1340
    %v1439 = vpack.c.b16 %v1348, %v1341
    %v1440 = vpack.c.b16 %v1349, %v1342
    %v1441 = vpack.c.b16 %v1350, %v1343
    %v1442 = vpack.c.b16 %v1351, %v1344
    %v1443 = vpack.c.b16 %v1352, %v1345
    %v1444 = vpack.c.b16 %v1353, %v1346
    %v1445 = vpack.c.b16 %v1361, %v1354
    %v1446 = vpack.c.b16 %v1362, %v1355
    %v1447 = vpack.c.b16 %v1363, %v1356
    %v1448 = vpack.c.b16 %v1364, %v1357
    %v1449 = vpack.c.b16 %v1365, %v1358
    %v1450 = vpack.c.b16 %v1366, %v1359
    %v1451 = vpack.c.b16 %v1367, %v1360
    %v1452 = vpack.c.b16 %v1375, %v1368
    %v1453 = vpack.c.b16 %v1376, %v1369
    %v1454 = vpack.c.b16 %v1377, %v1370
    %v1455 = vpack.c.b16 %v1378, %v1371
    %v1456 = vpack.c.b16 %v1379, %v1372
    %v1457 = vpack.c.b16 %v1380, %v1373
    %v1458 = vpack.c.b16 %v1381, %v1374
    %v1459 = vpack.c.b16 %v1389, %v1382
    %v1460 = vpack.c.b16 %v1390, %v1383
    %v1461 = vpack.c.b16 %v1391, %v1384
    %v1462 = vpack.c.b16 %v1392, %v1385
    %v1463 = vpack.c.b16 %v1393, %v1386
    %v1464 = vpack.c.b16 %v1394, %v1387
    %v1465 = vpack.c.b16 %v1395, %v1388
    %v1466 = vpack.c.b16 %v1403, %v1396
    %v1467 = vpack.c.b16 %v1404, %v1397
    %v1468 = vpack.c.b16 %v1405, %v1398
    %v1469 = vpack.c.b16 %v1406, %v1399
    %v1470 = vpack.c.b16 %v1407, %v1400
    %v1471 = vpack.c.b16 %v1408, %v1401
    %v1472 = vpack.c.b16 %v1409, %v1402
    %v1473 = vpack.c.b16 %v1417, %v1410
    %v1474 = vpack.c.b16 %v1418, %v1411
    %v1475 = vpack.c.b16 %v1419, %v1412
    %v1476 = vpack.c.b16 %v1420, %v1413
    %v1477 = vpack.c.b16 %v1421, %v1414
    %v1478 = vpack.c.b16 %v1422, %v1415
    %v1479 = vpack.c.b16 %v1423, %v1416
    %1536 = vmatprep.subr.bf16.mxu0 %v1425
    %1537 = vmatpush1.bf16.msra.mxu0 %v1424
    %1538 = vmatprep.subr.bf16.mxu0 %v1432
    %1539 = vmatpush1.bf16.msra.mxu0 %v1431
    %1540 = vmatprep.subr.bf16.mxu0 %v1439
    %1541 = vmatpush1.bf16.msra.mxu0 %v1438
    %1542 = vmatprep.subr.bf16.mxu0 %v1446
    %1543 = vmatpush1.bf16.msra.mxu0 %v1445
    %1544 = vmatprep.subr.bf16.mxu0 %v1453
    %1545 = vmatpush1.bf16.msra.mxu0 %v1452
    %1546 = vmatprep.subr.bf16.mxu0 %v1460
    %1547 = vmatpush1.bf16.msra.mxu0 %v1459
    %1548 = vmatprep.subr.bf16.mxu0 %v1467
    %1549 = vmatpush1.bf16.msra.mxu0 %v1466
    %1550 = vmatprep.subr.bf16.mxu0 %v1474
    %1551 = vmatpush1.bf16.msra.mxu0 %v1473
    %1552 = vmatprep.subr.bf16.mxu0 0
    %1553 = vmatpush1.bf16.msra.mxu0 0
    %1554 = vmatprep.subr.bf16.mxu0 0
    %1555 = vmatpush1.bf16.msra.mxu0 0
    %1556 = vmatprep.subr.bf16.mxu0 0
    %1557 = vmatpush1.bf16.msra.mxu0 0
    %1558 = vmatprep.subr.bf16.mxu0 0
    %1559 = vmatpush1.bf16.msra.mxu0 0
    %1560 = vmatprep.subr.bf16.mxu0 0
    %1561 = vmatpush1.bf16.msra.mxu0 0
    %1562 = vmatprep.subr.bf16.mxu0 0
    %1563 = vmatpush1.bf16.msra.mxu0 0
    %1564 = vmatprep.subr.bf16.mxu0 0
    %1565 = vmatpush1.bf16.msra.mxu0 0
    %1566 = vmatprep.subr.bf16.mxu0 0
    %1567 = vmatpush1.bf16.msra.mxu0 0
    %1568 = vmatprep.mubr.bf16.mxu0 0
    %1569 = vmatmul.mubr.bf16.gmra.mrb[0].mxu0 %v1145
    %v1570 = vpop.f32.mrb[0].mxu0
    %v1571 = vadd.f32 %v1216, %v1570
    %v1572 = vpop.f32.mrb[0].mxu0
    %v1573 = vadd.f32 %v1220, %v1572
    %v1574 = vpop.f32.mrb[0].mxu0
    %v1575 = vadd.f32 %v1216, %v1574
    %v1576 = vpop.f32.mrb[0].mxu0
    %v1577 = vadd.f32 %v1220, %v1576
    %1578 = vmatprep.mubr.bf16.mxu0 0
    %1579 = vmatmul.mubr.bf16.gmra.mrb[0].mxu0 %v1146
    %v1580 = vpop.f32.mrb[0].mxu0
    %v1581 = vadd.f32 %v1216, %v1580
    %v1582 = vpop.f32.mrb[0].mxu0
    %v1583 = vadd.f32 %v1220, %v1582
    %v1584 = vpop.f32.mrb[0].mxu0
    %v1585 = vadd.f32 %v1216, %v1584
    %v1586 = vpop.f32.mrb[0].mxu0
    %v1587 = vadd.f32 %v1220, %v1586
    %1588 = vdwg.mxu0
    %1589 = vmatprep.subr.bf16.mxu0 %v1427
    %1590 = vmatpush1.bf16.msra.mxu0 %v1426
    %1591 = vmatprep.subr.bf16.mxu0 %v1434
    %1592 = vmatpush1.bf16.msra.mxu0 %v1433
    %1593 = vmatprep.subr.bf16.mxu0 %v1441
    %1594 = vmatpush1.bf16.msra.mxu0 %v1440
    %1595 = vmatprep.subr.bf16.mxu0 %v1448
    %1596 = vmatpush1.bf16.msra.mxu0 %v1447
    %1597 = vmatprep.subr.bf16.mxu0 %v1455
    %1598 = vmatpush1.bf16.msra.mxu0 %v1454
    %1599 = vmatprep.subr.bf16.mxu0 %v1462
    %1600 = vmatpush1.bf16.msra.mxu0 %v1461
    %1601 = vmatprep.subr.bf16.mxu0 %v1469
    %1602 = vmatpush1.bf16.msra.mxu0 %v1468
    %1603 = vmatprep.subr.bf16.mxu0 %v1476
    %1604 = vmatpush1.bf16.msra.mxu0 %v1475
    %1605 = vmatprep.subr.bf16.mxu0 0
    %1606 = vmatpush1.bf16.msra.mxu0 0
    %1607 = vmatprep.subr.bf16.mxu0 0
    %1608 = vmatpush1.bf16.msra.mxu0 0
    %1609 = vmatprep.subr.bf16.mxu0 0
    %1610 = vmatpush1.bf16.msra.mxu0 0
    %1611 = vmatprep.subr.bf16.mxu0 0
    %1612 = vmatpush1.bf16.msra.mxu0 0
    %1613 = vmatprep.subr.bf16.mxu0 0
    %1614 = vmatpush1.bf16.msra.mxu0 0
    %1615 = vmatprep.subr.bf16.mxu0 0
    %1616 = vmatpush1.bf16.msra.mxu0 0
    %1617 = vmatprep.subr.bf16.mxu0 0
    %1618 = vmatpush1.bf16.msra.mxu0 0
    %1619 = vmatprep.subr.bf16.mxu0 0
    %1620 = vmatpush1.bf16.msra.mxu0 0
    %1621 = vmatprep.mubr.bf16.mxu0 0
    %1622 = vmatmul.mubr.bf16.gmra.mrb[0].mxu0 %v1145
    %v1623 = vpop.f32.mrb[0].mxu0
    %v1624 = vadd.f32 %v1224, %v1623
    %v1625 = vpop.f32.mrb[0].mxu0
    %v1626 = vadd.f32 %v1228, %v1625
    %v1627 = vpop.f32.mrb[0].mxu0
    %v1628 = vadd.f32 %v1224, %v1627
    %v1629 = vpop.f32.mrb[0].mxu0
    %v1630 = vadd.f32 %v1228, %v1629
    %1631 = vmatprep.mubr.bf16.mxu0 0
    %1632 = vmatmul.mubr.bf16.gmra.mrb[0].mxu0 %v1146
    %v1633 = vpop.f32.mrb[0].mxu0
    %v1634 = vadd.f32 %v1224, %v1633
    %v1635 = vpop.f32.mrb[0].mxu0
    %v1636 = vadd.f32 %v1228, %v1635
    %v1637 = vpop.f32.mrb[0].mxu0
    %v1638 = vadd.f32 %v1224, %v1637
    %v1639 = vpop.f32.mrb[0].mxu0
    %v1640 = vadd.f32 %v1228, %v1639
    %1641 = vdwg.mxu0
    %1642 = vmatprep.subr.bf16.mxu0 %v1429
    %1643 = vmatpush1.bf16.msra.mxu0 %v1428
    %1644 = vmatprep.subr.bf16.mxu0 %v1436
    %1645 = vmatpush1.bf16.msra.mxu0 %v1435
    %1646 = vmatprep.subr.bf16.mxu0 %v1443
    %1647 = vmatpush1.bf16.msra.mxu0 %v1442
    %1648 = vmatprep.subr.bf16.mxu0 %v1450
    %1649 = vmatpush1.bf16.msra.mxu0 %v1449
    %1650 = vmatprep.subr.bf16.mxu0 %v1457
    %1651 = vmatpush1.bf16.msra.mxu0 %v1456
    %1652 = vmatprep.subr.bf16.mxu0 %v1464
    %1653 = vmatpush1.bf16.msra.mxu0 %v1463
    %1654 = vmatprep.subr.bf16.mxu0 %v1471
    %1655 = vmatpush1.bf16.msra.mxu0 %v1470
    %1656 = vmatprep.subr.bf16.mxu0 %v1478
    %1657 = vmatpush1.bf16.msra.mxu0 %v1477
    %1658 = vmatprep.subr.bf16.mxu0 0
    %1659 = vmatpush1.bf16.msra.mxu0 0
    %1660 = vmatprep.subr.bf16.mxu0 0
    %1661 = vmatpush1.bf16.msra.mxu0 0
    %1662 = vmatprep.subr.bf16.mxu0 0
    %1663 = vmatpush1.bf16.msra.mxu0 0
    %1664 = vmatprep.subr.bf16.mxu0 0
    %1665 = vmatpush1.bf16.msra.mxu0 0
    %1666 = vmatprep.subr.bf16.mxu0 0
    %1667 = vmatpush1.bf16.msra.mxu0 0
    %1668 = vmatprep.subr.bf16.mxu0 0
    %1669 = vmatpush1.bf16.msra.mxu0 0
    %1670 = vmatprep.subr.bf16.mxu0 0
    %1671 = vmatpush1.bf16.msra.mxu0 0
    %1672 = vmatprep.subr.bf16.mxu0 0
    %1673 = vmatpush1.bf16.msra.mxu0 0
    %1674 = vmatprep.mubr.bf16.mxu0 0
    %1675 = vmatmul.mubr.bf16.gmra.mrb[0].mxu0 %v1145
    %v1676 = vpop.f32.mrb[0].mxu0
    %v1677 = vadd.f32 %v1232, %v1676
    %v1678 = vpop.f32.mrb[0].mxu0
    %v1679 = vadd.f32 %v1236, %v1678
    %v1680 = vpop.f32.mrb[0].mxu0
    %v1681 = vadd.f32 %v1232, %v1680
    %v1682 = vpop.f32.mrb[0].mxu0
    %v1683 = vadd.f32 %v1236, %v1682
    %1684 = vmatprep.mubr.bf16.mxu0 0
    %1685 = vmatmul.mubr.bf16.gmra.mrb[0].mxu0 %v1146
    %v1686 = vpop.f32.mrb[0].mxu0
    %v1687 = vadd.f32 %v1232, %v1686
    %v1688 = vpop.f32.mrb[0].mxu0
    %v1689 = vadd.f32 %v1236, %v1688
    %v1690 = vpop.f32.mrb[0].mxu0
    %v1691 = vadd.f32 %v1232, %v1690
    %v1692 = vpop.f32.mrb[0].mxu0
    %v1693 = vadd.f32 %v1236, %v1692
    %1694 = vdwg.mxu0
    %1695 = vmatprep.subr.bf16.mxu0 0
    %1696 = vmatpush1.bf16.msra.mxu0 %v1430
    %1697 = vmatprep.subr.bf16.mxu0 0
    %1698 = vmatpush1.bf16.msra.mxu0 %v1437
    %1699 = vmatprep.subr.bf16.mxu0 0
    %1700 = vmatpush1.bf16.msra.mxu0 %v1444
    %1701 = vmatprep.subr.bf16.mxu0 0
    %1702 = vmatpush1.bf16.msra.mxu0 %v1451
    %1703 = vmatprep.subr.bf16.mxu0 0
    %1704 = vmatpush1.bf16.msra.mxu0 %v1458
    %1705 = vmatprep.subr.bf16.mxu0 0
    %1706 = vmatpush1.bf16.msra.mxu0 %v1465
    %1707 = vmatprep.subr.bf16.mxu0 0
    %1708 = vmatpush1.bf16.msra.mxu0 %v1472
    %1709 = vmatprep.subr.bf16.mxu0 0
    %1710 = vmatpush1.bf16.msra.mxu0 %v1479
    %1711 = vmatprep.subr.bf16.mxu0 0
    %1712 = vmatpush1.bf16.msra.mxu0 0
    %1713 = vmatprep.subr.bf16.mxu0 0
    %1714 = vmatpush1.bf16.msra.mxu0 0
    %1715 = vmatprep.subr.bf16.mxu0 0
    %1716 = vmatpush1.bf16.msra.mxu0 0
    %1717 = vmatprep.subr.bf16.mxu0 0
    %1718 = vmatpush1.bf16.msra.mxu0 0
    %1719 = vmatprep.subr.bf16.mxu0 0
    %1720 = vmatpush1.bf16.msra.mxu0 0
    %1721 = vmatprep.subr.bf16.mxu0 0
    %1722 = vmatpush1.bf16.msra.mxu0 0
    %1723 = vmatprep.subr.bf16.mxu0 0
    %1724 = vmatpush1.bf16.msra.mxu0 0
    %1725 = vmatprep.subr.bf16.mxu0 0
    %1726 = vmatpush1.bf16.msra.mxu0 0
    %1727 = vmatprep.mubr.bf16.mxu0 0
    %1728 = vmatmul.mubr.bf16.gmra.mrb[0].mxu0 %v1145
    %v1729 = vpop.f32.mrb[0].mxu0
    %v1730 = vadd.f32 %v1240, %v1729
    %v1731 = vpop.f32.mrb[0].mxu0
    %v1732 = vpop.f32.mrb[0].mxu0
    %v1733 = vadd.f32 %v1240, %v1732
    %v1734 = vpop.f32.mrb[0].mxu0
    %1735 = vmatprep.mubr.bf16.mxu0 0
    %1736 = vmatmul.mubr.bf16.gmra.mrb[0].mxu0 %v1146
    %v1737 = vpop.f32.mrb[0].mxu0
    %v1738 = vadd.f32 %v1240, %v1737
    %v1739 = vpop.f32.mrb[0].mxu0
    %v1740 = vpop.f32.mrb[0].mxu0
    %v1741 = vadd.f32 %v1240, %v1740
    %v1742 = vpop.f32.mrb[0].mxu0
    %1743 = vdwg.mxu0
    %v1744 = vmul.f32 %v1571, 0.5
    %v1745 = vmul.f32 %v1573, 0.5
    %v1746 = vmul.f32 %v1624, 0.5
    %v1747 = vmul.f32 %v1626, 0.5
    %v1748 = vmul.f32 %v1677, 0.5
    %v1749 = vmul.f32 %v1679, 0.5
    %v1750 = vmul.f32 %v1730, 0.5
    %v1751 = vmul.f32 %v1575, 0.5
    %v1752 = vmul.f32 %v1577, 0.5
    %v1753 = vmul.f32 %v1628, 0.5
    %v1754 = vmul.f32 %v1630, 0.5
    %v1755 = vmul.f32 %v1681, 0.5
    %v1756 = vmul.f32 %v1683, 0.5
    %v1757 = vmul.f32 %v1733, 0.5
    %v1758 = vmul.f32 %v1581, 0.5
    %v1759 = vmul.f32 %v1583, 0.5
    %v1760 = vmul.f32 %v1634, 0.5
    %v1761 = vmul.f32 %v1636, 0.5
    %v1762 = vmul.f32 %v1687, 0.5
    %v1763 = vmul.f32 %v1689, 0.5
    %v1764 = vmul.f32 %v1738, 0.5
    %v1765 = vmul.f32 %v1585, 0.5
    %v1766 = vmul.f32 %v1587, 0.5
    %v1767 = vmul.f32 %v1638, 0.5
    %v1768 = vmul.f32 %v1640, 0.5
    %v1769 = vmul.f32 %v1691, 0.5
    %v1770 = vmul.f32 %v1693, 0.5
    %v1771 = vmul.f32 %v1741, 0.5
    %v1772 = vtanh.pop %v1744
    %v1773 = vtanh.pop %v1745
    %v1774 = vtanh.pop %v1746
    %v1775 = vtanh.pop %v1747
    %v1776 = vtanh.pop %v1748
    %v1777 = vtanh.pop %v1749
    %v1778 = vtanh.pop %v1750
    %v1779 = vtanh.pop %v1751
    %v1780 = vtanh.pop %v1752
    %v1781 = vtanh.pop %v1753
    %v1782 = vtanh.pop %v1754
    %v1783 = vtanh.pop %v1755
    %v1784 = vtanh.pop %v1756
    %v1785 = vtanh.pop %v1757
    %v1786 = vtanh.pop %v1758
    %v1787 = vtanh.pop %v1759
    %v1788 = vtanh.pop %v1760
    %v1789 = vtanh.pop %v1761
    %v1790 = vtanh.pop %v1762
    %v1791 = vtanh.pop %v1763
    %v1792 = vtanh.pop %v1764
    %v1793 = vtanh.pop %v1765
    %v1794 = vtanh.pop %v1766
    %v1795 = vtanh.pop %v1767
    %v1796 = vtanh.pop %v1768
    %v1797 = vtanh.pop %v1769
    %v1798 = vtanh.pop %v1770
    %v1799 = vtanh.pop %v1771
    %v1800 = vmul.f32 %v1772, 0.5
    %v1801 = vmul.f32 %v1773, 0.5
    %v1802 = vmul.f32 %v1774, 0.5
    %v1803 = vmul.f32 %v1775, 0.5
    %v1804 = vmul.f32 %v1776, 0.5
    %v1805 = vmul.f32 %v1777, 0.5
    %v1806 = vmul.f32 %v1778, 0.5
    %v1807 = vmul.f32 %v1779, 0.5
    %v1808 = vmul.f32 %v1780, 0.5
    %v1809 = vmul.f32 %v1781, 0.5
    %v1810 = vmul.f32 %v1782, 0.5
    %v1811 = vmul.f32 %v1783, 0.5
    %v1812 = vmul.f32 %v1784, 0.5
    %v1813 = vmul.f32 %v1785, 0.5
    %v1814 = vmul.f32 %v1786, 0.5
    %v1815 = vmul.f32 %v1787, 0.5
    %v1816 = vmul.f32 %v1788, 0.5
    %v1817 = vmul.f32 %v1789, 0.5
    %v1818 = vmul.f32 %v1790, 0.5
    %v1819 = vmul.f32 %v1791, 0.5
    %v1820 = vmul.f32 %v1792, 0.5
    %v1821 = vmul.f32 %v1793, 0.5
    %v1822 = vmul.f32 %v1794, 0.5
    %v1823 = vmul.f32 %v1795, 0.5
    %v1824 = vmul.f32 %v1796, 0.5
    %v1825 = vmul.f32 %v1797, 0.5
    %v1826 = vmul.f32 %v1798, 0.5
    %v1827 = vmul.f32 %v1799, 0.5
    %v1828 = vadd.f32 %v1800, 0.5
    %v1829 = vadd.f32 %v1801, 0.5
    %v1830 = vadd.f32 %v1802, 0.5
    %v1831 = vadd.f32 %v1803, 0.5
    %v1832 = vadd.f32 %v1804, 0.5
    %v1833 = vadd.f32 %v1805, 0.5
    %v1834 = vadd.f32 %v1806, 0.5
    %v1835 = vadd.f32 %v1807, 0.5
    %v1836 = vadd.f32 %v1808, 0.5
    %v1837 = vadd.f32 %v1809, 0.5
    %v1838 = vadd.f32 %v1810, 0.5
    %v1839 = vadd.f32 %v1811, 0.5
    %v1840 = vadd.f32 %v1812, 0.5
    %v1841 = vadd.f32 %v1813, 0.5
    %v1842 = vadd.f32 %v1814, 0.5
    %v1843 = vadd.f32 %v1815, 0.5
    %v1844 = vadd.f32 %v1816, 0.5
    %v1845 = vadd.f32 %v1817, 0.5
    %v1846 = vadd.f32 %v1818, 0.5
    %v1847 = vadd.f32 %v1819, 0.5
    %v1848 = vadd.f32 %v1820, 0.5
    %v1849 = vadd.f32 %v1821, 0.5
    %v1850 = vadd.f32 %v1822, 0.5
    %v1851 = vadd.f32 %v1823, 0.5
    %v1852 = vadd.f32 %v1824, 0.5
    %v1853 = vadd.f32 %v1825, 0.5
    %v1854 = vadd.f32 %v1826, 0.5
    %v1855 = vadd.f32 %v1827, 0.5
    %v1856 = vpack.c.bf16 %v1835, %v1828
    %v1857 = vpack.c.bf16 %v1836, %v1829
    %v1858 = vpack.c.bf16 %v1837, %v1830
    %v1859 = vpack.c.bf16 %v1838, %v1831
    %v1860 = vpack.c.bf16 %v1839, %v1832
    %v1861 = vpack.c.bf16 %v1840, %v1833
    %v1862 = vpack.c.bf16 %v1841, %v1834
    %v1863 = vpack.c.bf16 %v1849, %v1842
    %v1864 = vpack.c.bf16 %v1850, %v1843
    %v1865 = vpack.c.bf16 %v1851, %v1844
    %v1866 = vpack.c.bf16 %v1852, %v1845
    %v1867 = vpack.c.bf16 %v1853, %v1846
    %v1868 = vpack.c.bf16 %v1854, %v1847
    %v1869 = vpack.c.bf16 %v1855, %v1848
    %v1884 = vunpack.c.l.b16 %v1856
    %v1885 = vunpack.c.l.b16 %v1857
    %v1886 = vunpack.c.l.b16 %v1858
    %v1887 = vunpack.c.l.b16 %v1859
    %v1888 = vunpack.c.l.b16 %v1860
    %v1889 = vunpack.c.l.b16 %v1861
    %v1890 = vunpack.c.l.b16 %v1862
    %v1891 = vunpack.c.h.b16 %v1856
    %v1892 = vunpack.c.h.b16 %v1857
    %v1893 = vunpack.c.h.b16 %v1858
    %v1894 = vunpack.c.h.b16 %v1859
    %v1895 = vunpack.c.h.b16 %v1860
    %v1896 = vunpack.c.h.b16 %v1861
    %v1897 = vunpack.c.h.b16 %v1862
    %v1898 = vunpack.c.l.b16 %v1863
    %v1899 = vunpack.c.l.b16 %v1864
    %v1900 = vunpack.c.l.b16 %v1865
    %v1901 = vunpack.c.l.b16 %v1866
    %v1902 = vunpack.c.l.b16 %v1867
    %v1903 = vunpack.c.l.b16 %v1868
    %v1904 = vunpack.c.l.b16 %v1869
    %v1905 = vunpack.c.h.b16 %v1863
    %v1906 = vunpack.c.h.b16 %v1864
    %v1907 = vunpack.c.h.b16 %v1865
    %v1908 = vunpack.c.h.b16 %v1866
    %v1909 = vunpack.c.h.b16 %v1867
    %v1910 = vunpack.c.h.b16 %v1868
    %v1911 = vunpack.c.h.b16 %v1869
    %v1912 = vpack.c.b16 %v1885, %v1884
    %v1913 = vpack.c.b16 %v1887, %v1886
    %v1914 = vpack.c.b16 %v1889, %v1888
    %v1915 = vpack.c.b16 %v1890, %v1890
    %v1916 = vpack.c.b16 %v1892, %v1891
    %v1917 = vpack.c.b16 %v1894, %v1893
    %v1918 = vpack.c.b16 %v1896, %v1895
    %v1919 = vpack.c.b16 %v1897, %v1897
    %v1920 = vpack.c.b16 %v1899, %v1898
    %v1921 = vpack.c.b16 %v1901, %v1900
    %v1922 = vpack.c.b16 %v1903, %v1902
    %v1923 = vpack.c.b16 %v1904, %v1904
    %v1924 = vpack.c.b16 %v1906, %v1905
    %v1925 = vpack.c.b16 %v1908, %v1907
    %v1926 = vpack.c.b16 %v1910, %v1909
    %v1927 = vpack.c.b16 %v1911, %v1911
    %1944 = vst [vmem:[#allocation2] sm:$0xff] %v1912
    %1945 = vst [vmem:[#allocation2 + $0x8] sm:$0xff] %v1913
    %1946 = vst [vmem:[#allocation2 + $0x10] sm:$0xff] %v1914
    %vm1947 = vcmask 125952
    %1948 = vst.msk [vmem:[#allocation2 + $0x18] sm:$0xf] %vm1947, %v1915
    %1949 = vst [vmem:[#allocation2 + $0x1c] sm:$0xff] %v1916
    %1950 = vst [vmem:[#allocation2 + $0x24] sm:$0xff] %v1917
    %1951 = vst [vmem:[#allocation2 + $0x2c] sm:$0xff] %v1918
    %1952 = vst.msk [vmem:[#allocation2 + $0x34] sm:$0xf] %vm1947, %v1919
    %1953 = vst [vmem:[#allocation2 + $0x38] sm:$0xff] %v1920
    %1954 = vst [vmem:[#allocation2 + $0x40] sm:$0xff] %v1921
    %1955 = vst [vmem:[#allocation2 + $0x48] sm:$0xff] %v1922
    %1956 = vst.msk [vmem:[#allocation2 + $0x50] sm:$0xf] %vm1947, %v1923
    %1957 = vst [vmem:[#allocation2 + $0x54] sm:$0xff] %v1924
    %1958 = vst [vmem:[#allocation2 + $0x5c] sm:$0xff] %v1925
    %1959 = vst [vmem:[#allocation2 + $0x64] sm:$0xff] %v1926
    %1960 = vst.msk [vmem:[#allocation2 + $0x6c] sm:$0xf] %vm1947, %v1927
    // Predicated region
    $region54: #{autoencoder_forward.1} parent=1 // pred_check
      _
    $region55: #{autoencoder_forward.1} parent=1 // pred_check_branch
      %1962 = sbr.rel (0) target = $region57
    $region56: #{autoencoder_forward.1} parent=1 // pred_region
      %s1964 = ssub.s32 1792, 1792
      %1965 = vsyncadd [#allocation3], %s1964
      %s1966 = sshll.u32 [#allocation2], 4
      %s1967 = int_to_ptr.vmem [resolvable:$true] %s1966
      %1972 = dma.vmem_to_hbm [thread:$0]  %s1967, 1792, %s13, [#allocation3], 448, 448, 28
    $region57: #{autoencoder_forward.1} parent=1 // pred_fallthru
      _
    // Predicated region
    $region58: #{autoencoder_forward.1} parent=1 // pred_check
      _
    $region59: #{autoencoder_forward.1} parent=1 // pred_check_branch
      %1974 = sbr.rel (0) target = $region61
    $region60: #{autoencoder_forward.1} parent=1 // pred_region
      %1975 = dma.done [#allocation3], 1792
    $region61: #{autoencoder_forward.1} parent=1 // pred_fallthru
      _
    %1976 = vsyncpa [#allocation3], 1

</llo_original>
